<compile_context>
chip_gen: v5e
topology: v5e:2x2
jax: 0.10.0
libtpu: 0.0.40
codegen_flags: <defaults>
</compile_context>

<pallas_src>
import functools

import jax
import jax.numpy as jnp
from jax.experimental import pallas as pl
from jax.experimental.pallas import tpu as pltpu


# ---------------------------------------------------------------------------
# Fused kernel: residual-add + LayerNorm + mixer(Linear D->D), one token tile
# ---------------------------------------------------------------------------
def _ln_then_mixer(x_f32, nw_ref, nb_ref, mw_ref, mb_ref, out_dtype, eps):
    """LayerNorm over last axis of x_f32 (f32 math), then Linear(D, D) on MXU."""
    d = x_f32.shape[-1]
    inv_d = 1.0 / d
    # Single-sweep statistics: var = E[x^2] - mean^2 (no centering pass).
    mean = jnp.sum(x_f32, axis=-1, keepdims=True) * inv_d
    mean_sq = jnp.sum(x_f32 * x_f32, axis=-1, keepdims=True) * inv_d
    var = mean_sq - mean * mean
    y = (x_f32 - mean) * jax.lax.rsqrt(var + eps)
    y = y * nw_ref[...].astype(jnp.float32) + nb_ref[...].astype(jnp.float32)
    # bf16 operands into the MXU, f32 accumulation.
    y = y.astype(mw_ref.dtype)
    out = jnp.dot(y, mw_ref[...], preferred_element_type=jnp.float32)
    out = out + mb_ref[...].astype(jnp.float32)
    return out.astype(out_dtype)


def _fused_add_ln_mixer_kernel(hs_ref, res_ref, nw_ref, nb_ref, mw_ref, mb_ref,
                               hs_out_ref, res_out_ref, *, eps):
    # hs_ref / res_ref: (TM, D) row tile; norm params (1, D); mixer_w (D, D).
    x = hs_ref[...].astype(jnp.float32) + res_ref[...].astype(jnp.float32)
    res_out_ref[...] = x.astype(res_out_ref.dtype)     # residual_in_fp32 path
    hs_out_ref[...] = _ln_then_mixer(x, nw_ref, nb_ref, mw_ref, mb_ref,
                                     hs_out_ref.dtype, eps)


def _fused_ln_mixer_first_kernel(hs_ref, nw_ref, nb_ref, mw_ref, mb_ref,
                                 hs_out_ref, res_out_ref, *, eps):
    # First block: residual is None -> residual = hidden_states (no zeros DMA).
    x = hs_ref[...].astype(jnp.float32)
    res_out_ref[...] = x.astype(res_out_ref.dtype)
    hs_out_ref[...] = _ln_then_mixer(x, nw_ref, nb_ref, mw_ref, mb_ref,
                                     hs_out_ref.dtype, eps)


def _pick_tm(rows, requested_tm, *, min_grid=8):
    """Largest sublane-aligned TM <= requested that divides `rows` evenly and
    gives an even grid of >= min_grid steps (v7x megacore balance, no masked
    partial tile).  Falls back progressively for small / awkward row counts."""
    cap = min(requested_tm, rows)
    cap = max(8, (cap // 8) * 8) if rows >= 8 else rows
    candidates = [t for t in range(cap, 7, -8) if rows % t == 0]
    for t in candidates:                      # prefer: even grid, >= min_grid
        g = rows // t
        if g >= min_grid and g % 2 == 0:
            return t
    for t in candidates:                      # next: even grid
        if (rows // t) % 2 == 0:
            return t
    if candidates:                            # next: any exact divisor
        return candidates[0]
    return cap                                # partial last tile (masked; row-wise ops)


def _vmem_limit_bytes(tm, d, hs_itemsize, res_in_itemsize, res_out_itemsize,
                      w_itemsize):
    # Double-buffered row tiles (hs in, res in, hs out, res out) + resident
    # weight/vectors + generous headroom for in-kernel f32 intermediates.
    tile = tm * d * (2 * hs_itemsize + res_in_itemsize + res_out_itemsize)
    resident = 2 * d * d * w_itemsize + 8 * d * 4
    est = 2 * tile + resident
    return int(min(48 * 1024 * 1024, max(32 * 1024 * 1024, 2 * est)))


def fused_add_ln_mixer(hidden_states, residual, params, *,
                       eps=1e-5, residual_in_fp32=True, tm=1024):
    """Single pallas_call: (add) + LayerNorm + Linear(D,D) mixer, token-tiled."""
    B, M, D = hidden_states.shape
    rows = B * M
    tm = _pick_tm(rows, tm)
    grid = (pl.cdiv(rows, tm),)

    hs2d = hidden_states.reshape(rows, D)
    nw = params["norm_weight"].astype(jnp.float32).reshape(1, D)
    nb = params["norm_bias"].astype(jnp.float32).reshape(1, D)
    mw = params["mixer_weight"].astype(jnp.bfloat16)          # (D, D), resident
    mb = params["mixer_bias"].astype(jnp.float32).reshape(1, D)
    res_dtype = jnp.float32 if residual_in_fp32 else hidden_states.dtype

    row_spec_hs_in = pl.BlockSpec((tm, D), lambda i: (i, 0))
    row_spec_hs_out = pl.BlockSpec((tm, D), lambda i: (i, 0))
    row_spec_res = pl.BlockSpec((tm, D), lambda i: (i, 0))
    vec_spec = pl.BlockSpec((1, D), lambda i: (0, 0))          # resident
    mat_spec = pl.BlockSpec((D, D), lambda i: (0, 0))          # resident

    out_shape = (jax.ShapeDtypeStruct((rows, D), hidden_states.dtype),
                 jax.ShapeDtypeStruct((rows, D), res_dtype))
    out_specs = (row_spec_hs_out, row_spec_res)

    vmem_limit = _vmem_limit_bytes(
        tm, D,
        jnp.dtype(hidden_states.dtype).itemsize,
        0 if residual is None else jnp.dtype(residual.dtype).itemsize,
        jnp.dtype(res_dtype).itemsize,
        jnp.dtype(mw.dtype).itemsize)
    compiler_params = pltpu.CompilerParams(
        dimension_semantics=("parallel",),      # v7x: shard tiles across 2 TCs
        vmem_limit_bytes=vmem_limit)

    if residual is None:
        kernel = functools.partial(_fused_ln_mixer_first_kernel, eps=eps)
        in_specs = [row_spec_hs_in, vec_spec, vec_spec, mat_spec, vec_spec]
        args = (hs2d, nw, nb, mw, mb)
        io_aliases = {}
    else:
        kernel = functools.partial(_fused_add_ln_mixer_kernel, eps=eps)
        in_specs = [row_spec_hs_in, row_spec_res, vec_spec, vec_spec, mat_spec,
                    vec_spec]
        res2d = residual.reshape(rows, D)
        args = (hs2d, res2d, nw, nb, mw, mb)
        # Alias residual input -> residual output when dtypes match (f32->f32):
        # no second rows x D f32 HBM buffer per block.
        io_aliases = {1: 1} if res2d.dtype == res_dtype else {}

    hs_out, res_out = pl.pallas_call(
        kernel,
        out_shape=out_shape,
        grid=grid,
        in_specs=in_specs,
        out_specs=out_specs,
        input_output_aliases=io_aliases,
        compiler_params=compiler_params,
    )(*args)
    return hs_out.reshape(B, M, D), res_out.reshape(B, M, D)


# ---------------------------------------------------------------------------
# Block forward
# ---------------------------------------------------------------------------
def block_forward(hidden_states, residual, params, *, layer_idx, token_size,
                  rotate_every_block=True, residual_in_fp32=True, eps=1e-5,
                  tm=1024):
    # Odd-layer rotation (transpose of the HxW token grid) around the mixer:
    # the stand-in mixer is applied independently per token, so
    # rotate -> mix -> rotate_back == mix exactly; the permutation is elided
    # (zero extra HBM traffic) instead of two XLA transpose round trips.
    # TODO(synk): reinstate the rotation (via index_map) once the real
    # token-sequential Mamba mixer is plugged in.
    del layer_idx, token_size, rotate_every_block
    return fused_add_ln_mixer(hidden_states, residual, params,
                              eps=eps, residual_in_fp32=residual_in_fp32,
                              tm=tm)


# ---------------------------------------------------------------------------
# Pure-JAX reference (mirrors the PyTorch forward, rotation included)
# ---------------------------------------------------------------------------
def block_forward_ref(hidden_states, residual, params, *, layer_idx,
                      token_size, rotate_every_block=True,
                      residual_in_fp32=True, eps=1e-5):
    B, M, D = hidden_states.shape
    if residual is None:
        residual = hidden_states
    else:
        residual = residual + hidden_states
    r32 = residual.astype(jnp.float32)
    mean = r32.mean(-1, keepdims=True)
    var = ((r32 - mean) ** 2).mean(-1, keepdims=True)
    hs = ((r32 - mean) / jnp.sqrt(var + eps)) * params["norm_weight"] \
         + params["norm_bias"]
    hs = hs.astype(hidden_states.dtype)
    residual = r32 if residual_in_fp32 else residual

    rotate = rotate_every_block and (layer_idx % 2 != 0)
    H, W = token_size
    if rotate:
        hs = hs.reshape(B, H, W, D).transpose(0, 2, 1, 3).reshape(B, M, D)
    hs = (hs.astype(jnp.float32) @ params["mixer_weight"]
          + params["mixer_bias"]).astype(hidden_states.dtype)
    if rotate:
        hs = hs.reshape(B, W, H, D).transpose(0, 2, 1, 3).reshape(B, M, D)
    return hs, residual


if __name__ == "__main__":
    key = jax.random.PRNGKey(0)
    k1, k2, k3, k4, k5, k6 = jax.random.split(key, 6)

    # Small but lane-dense config: D = 128 (full lane width), B*M = 2048 rows
    # -> _pick_tm gives TM=256 with an even 8-step grid (pipelined; balanced
    # across both TCs on v7x).  Activations are bf16; residual is f32.
    B, H, W, D = 2, 32, 32, 128
    M = H * W
    token_size = (H, W)
    layer_idx = 1  # odd -> exercises the rotate branch semantics

    params = {
        # LayerNorm affine params (deterministic, slightly perturbed)
        "norm_weight": 1.0 + 0.1 * jax.random.normal(k1, (D,), jnp.float32),
        "norm_bias": 0.05 * jax.random.normal(k2, (D,), jnp.float32),
        # Mixer (Linear dim->dim stand-in)
        "mixer_weight": (jax.random.normal(k3, (D, D), jnp.float32)
                         / jnp.sqrt(D)),
        "mixer_bias": 0.02 * jax.random.normal(k4, (D,), jnp.float32),
    }

    hidden_states = jax.random.normal(k5, (B, M, D), jnp.float32).astype(
        jnp.bfloat16)
    residual = jax.random.normal(k6, (B, M, D), jnp.float32)

    # Compute references first (residual input may be aliased by the kernel).
    hs_ref, res_ref = block_forward_ref(
        hidden_states, residual, params,
        layer_idx=layer_idx, token_size=token_size)
    hs0_ref, res0_ref = block_forward_ref(
        hidden_states, None, params, layer_idx=0, token_size=token_size)

    # Regular block (residual provided, odd layer)
    hs_out, res_out = block_forward(
        hidden_states, residual, params,
        layer_idx=layer_idx, token_size=token_size)
    jax.block_until_ready((hs_out, res_out))

    assert jnp.allclose(hs_out.astype(jnp.float32), hs_ref.astype(jnp.float32),
                        atol=5e-2, rtol=5e-2)
    assert jnp.allclose(res_out, res_ref, atol=1e-5, rtol=1e-5)

    # First block (residual=None, even layer) — no zeros tensor streamed.
    hs0, res0 = block_forward(
        hidden_states, None, params, layer_idx=0, token_size=token_size)
    jax.block_until_ready((hs0, res0))
    assert jnp.allclose(hs0.astype(jnp.float32), hs0_ref.astype(jnp.float32),
                        atol=5e-2, rtol=5e-2)
    assert jnp.allclose(res0, res0_ref, atol=1e-5, rtol=1e-5)

    print("KERNEL_OK")
</pallas_src>

<mosaic_0001>
module attributes {stable_mosaic.version = 11 : i64} {
  func.func @_fused_add_ln_mixer_kernel(%arg0: i32, %arg1: memref<256x128xbf16, #tpu.memory_space<vmem>>, %arg2: memref<256x128xf32, #tpu.memory_space<vmem>>, %arg3: memref<1x128xf32, #tpu.memory_space<vmem>>, %arg4: memref<1x128xf32, #tpu.memory_space<vmem>>, %arg5: memref<128x128xbf16, #tpu.memory_space<vmem>>, %arg6: memref<1x128xf32, #tpu.memory_space<vmem>>, %arg7: memref<256x128xbf16, #tpu.memory_space<vmem>>, %arg8: memref<256x128xf32, #tpu.memory_space<vmem>>) attributes {dimension_semantics = [#tpu.dimension_semantics<parallel>], iteration_bounds = array<i64: 8>, scalar_prefetch = 0 : i64, scratch_operands = 0 : i64, tpu.core_type = #tpu.core_type<tc>, window_params = [{transform_indices = @transform_0, window_bounds = array<i64: 256, 128>}, {transform_indices = @transform_1, window_bounds = array<i64: 256, 128>}, {pipeline_mode = #tpu.pipeline_mode<synchronous>, transform_indices = @transform_2, window_bounds = array<i64: 1, 128>}, {pipeline_mode = #tpu.pipeline_mode<synchronous>, transform_indices = @transform_3, window_bounds = array<i64: 1, 128>}, {pipeline_mode = #tpu.pipeline_mode<synchronous>, transform_indices = @transform_4, window_bounds = array<i64: 128, 128>}, {pipeline_mode = #tpu.pipeline_mode<synchronous>, transform_indices = @transform_5, window_bounds = array<i64: 1, 128>}, {transform_indices = @transform_6, window_bounds = array<i64: 256, 128>}, {transform_indices = @transform_7, window_bounds = array<i64: 256, 128>}]} {
    %c0 = arith.constant 0 : index
    %c0_0 = arith.constant 0 : index
    %0 = vector.load %arg1[%c0, %c0_0] : memref<256x128xbf16, #tpu.memory_space<vmem>>, vector<256x128xbf16>
    %1 = arith.extf %0 : vector<256x128xbf16> to vector<256x128xf32>
    %c0_1 = arith.constant 0 : index
    %c0_2 = arith.constant 0 : index
    %2 = vector.load %arg2[%c0_1, %c0_2] : memref<256x128xf32, #tpu.memory_space<vmem>>, vector<256x128xf32>
    %3 = arith.addf %1, %2 : vector<256x128xf32>
    %c0_3 = arith.constant 0 : index
    %c0_4 = arith.constant 0 : index
    %4 = vector.load %arg8[%c0_3, %c0_4] : memref<256x128xf32, #tpu.memory_space<vmem>>, vector<256x128xf32>
    tpu.vector_store %arg8[%c0_3, %c0_4], %3 {strides = array<i32>} : memref<256x128xf32, #tpu.memory_space<vmem>>, vector<256x128xf32>,
    %cst = arith.constant dense<0.000000e+00> : vector<256xf32>
    %5 = vector.multi_reduction <add>, %3, %cst [1] : vector<256x128xf32> to vector<256xf32>
    %6 = vector.shape_cast %5 : vector<256xf32> to vector<256x1xf32>
    %cst_5 = arith.constant 7.812500e-03 : f32
    %7 = vector.broadcast %cst_5 : f32 to vector<256x1xf32>
    %8 = arith.mulf %6, %7 : vector<256x1xf32>
    %9 = arith.mulf %3, %3 : vector<256x128xf32>
    %cst_6 = arith.constant dense<0.000000e+00> : vector<256xf32>
    %10 = vector.multi_reduction <add>, %9, %cst_6 [1] : vector<256x128xf32> to vector<256xf32>
    %11 = vector.shape_cast %10 : vector<256xf32> to vector<256x1xf32>
    %cst_7 = arith.constant 7.812500e-03 : f32
    %12 = vector.broadcast %cst_7 : f32 to vector<256x1xf32>
    %13 = arith.mulf %11, %12 : vector<256x1xf32>
    %14 = arith.mulf %8, %8 : vector<256x1xf32>
    %15 = arith.subf %13, %14 : vector<256x1xf32>
    %16 = vector.broadcast %8 : vector<256x1xf32> to vector<256x128xf32>
    %17 = arith.subf %3, %16 : vector<256x128xf32>
    %cst_8 = arith.constant 9.99999974E-6 : f32
    %18 = vector.broadcast %cst_8 : f32 to vector<256x1xf32>
    %19 = arith.addf %15, %18 : vector<256x1xf32>
    %20 = math.rsqrt %19 : vector<256x1xf32>
    %21 = vector.broadcast %20 : vector<256x1xf32> to vector<256x128xf32>
    %22 = arith.mulf %17, %21 : vector<256x128xf32>
    %c0_9 = arith.constant 0 : index
    %c0_10 = arith.constant 0 : index
    %23 = vector.load %arg3[%c0_9, %c0_10] : memref<1x128xf32, #tpu.memory_space<vmem>>, vector<1x128xf32>
    %24 = vector.broadcast %23 : vector<1x128xf32> to vector<256x128xf32>
    %25 = arith.mulf %22, %24 : vector<256x128xf32>
    %c0_11 = arith.constant 0 : index
    %c0_12 = arith.constant 0 : index
    %26 = vector.load %arg4[%c0_11, %c0_12] : memref<1x128xf32, #tpu.memory_space<vmem>>, vector<1x128xf32>
    %27 = vector.broadcast %26 : vector<1x128xf32> to vector<256x128xf32>
    %28 = arith.addf %25, %27 : vector<256x128xf32>
    %29 = arith.truncf %28 : vector<256x128xf32> to vector<256x128xbf16>
    %c0_13 = arith.constant 0 : index
    %c0_14 = arith.constant 0 : index
    %30 = vector.load %arg5[%c0_13, %c0_14] : memref<128x128xbf16, #tpu.memory_space<vmem>>, vector<128x128xbf16>
    %cst_15 = arith.constant dense<0.000000e+00> : vector<256x128xf32>
    %31 = tpu.matmul %29, %30, %cst_15 {dimension_numbers = #tpu.dot_dimension_numbers<[1], [0], [0], [1], [0, 0, 1, 1], [], []>} : vector<256x128xbf16>, vector<128x128xbf16>, vector<256x128xf32> -> vector<256x128xf32>
    %c0_16 = arith.constant 0 : index
    %c0_17 = arith.constant 0 : index
    %32 = vector.load %arg6[%c0_16, %c0_17] : memref<1x128xf32, #tpu.memory_space<vmem>>, vector<1x128xf32>
    %33 = vector.broadcast %32 : vector<1x128xf32> to vector<256x128xf32>
    %34 = arith.addf %31, %33 : vector<256x128xf32>
    %35 = arith.truncf %34 : vector<256x128xf32> to vector<256x128xbf16>
    %c0_18 = arith.constant 0 : index
    %c0_19 = arith.constant 0 : index
    %36 = vector.load %arg7[%c0_18, %c0_19] : memref<256x128xbf16, #tpu.memory_space<vmem>>, vector<256x128xbf16>
    tpu.vector_store %arg7[%c0_18, %c0_19], %35 {strides = array<i32>} : memref<256x128xbf16, #tpu.memory_space<vmem>>, vector<256x128xbf16>,
    return
  }
  func.func @transform_0(%arg0: i32) -> (i32, i32) {
    %c0_i32 = arith.constant 0 : i32
    %c0_i32_0 = arith.constant 0 : i32
    return %arg0, %c0_i32 : i32, i32
  }
  func.func @transform_1(%arg0: i32) -> (i32, i32) {
    %c0_i32 = arith.constant 0 : i32
    %c0_i32_0 = arith.constant 0 : i32
    return %arg0, %c0_i32 : i32, i32
  }
  func.func @transform_2(%arg0: i32) -> (i32, i32) {
    %c0_i32 = arith.constant 0 : i32
    %c0_i32_0 = arith.constant 0 : i32
    %c0_i32_1 = arith.constant 0 : i32
    return %c0_i32, %c0_i32_0 : i32, i32
  }
  func.func @transform_3(%arg0: i32) -> (i32, i32) {
    %c0_i32 = arith.constant 0 : i32
    %c0_i32_0 = arith.constant 0 : i32
    %c0_i32_1 = arith.constant 0 : i32
    return %c0_i32, %c0_i32_0 : i32, i32
  }
  func.func @transform_4(%arg0: i32) -> (i32, i32) {
    %c0_i32 = arith.constant 0 : i32
    %c0_i32_0 = arith.constant 0 : i32
    %c0_i32_1 = arith.constant 0 : i32
    return %c0_i32, %c0_i32_0 : i32, i32
  }
  func.func @transform_5(%arg0: i32) -> (i32, i32) {
    %c0_i32 = arith.constant 0 : i32
    %c0_i32_0 = arith.constant 0 : i32
    %c0_i32_1 = arith.constant 0 : i32
    return %c0_i32, %c0_i32_0 : i32, i32
  }
  func.func @transform_6(%arg0: i32) -> (i32, i32) {
    %c0_i32 = arith.constant 0 : i32
    %c0_i32_0 = arith.constant 0 : i32
    return %arg0, %c0_i32 : i32, i32
  }
  func.func @transform_7(%arg0: i32) -> (i32, i32) {
    %c0_i32 = arith.constant 0 : i32
    %c0_i32_0 = arith.constant 0 : i32
    return %arg0, %c0_i32 : i32, i32
  }
}

</mosaic_0001>

<llo_original>
// kernel: tpu_custom_call.1
$region0: #{tpu_custom_call.1}
  #allocation0 [shape = 'u32[]', space=smem, size = 0x4, offset = 0x4, fixed_abs, tag = 'smem constant byte address 0x4 - core index']
  #allocation1 [shape = 'u32[72,128]{1,0:T(1,128)}', space=vmem, size = 0x9000, scoped, tag = 'internal scratch']
  %s0 = inlined_call_operand.vmem [shape: bf16[2048,128], index: 0, kind: input, shape index: {}]
  %s1 = inlined_call_operand.hbm [shape: f32[2048,128], index: 1, kind: input, shape index: {}, may-alias: {1,7}]
  %s2 = inlined_call_operand.vmem [shape: f32[1,128], index: 2, kind: input, shape index: {}]
  %s3 = inlined_call_operand.vmem [shape: f32[1,128], index: 3, kind: input, shape index: {}]
  %s4 = inlined_call_operand.vmem [shape: bf16[128,128], index: 4, kind: input, shape index: {}]
  %s5 = inlined_call_operand.vmem [shape: f32[1,128], index: 5, kind: input, shape index: {}]
  %s6 = inlined_call_operand.hbm [shape: bf16[2048,128], index: 6, kind: output, shape index: {0}]
  %s7 = inlined_call_operand.hbm [shape: f32[2048,128], index: 7, kind: output, shape index: {1}, may-alias: {1,7}]
  %8 = xla_tuple %s6, %s7
  %s9 = sld [smem:[#allocation0]]
  $region69: #{tpu_custom_call.1} parent=0
    _
  %s11 = ssub.s32 1, %s9
  %s12 = scalar_select 0, %s11, %s9
  $region1: #{tpu_custom_call.1} parent=0
    #allocation2 [shape = 'u8[262144]{0}', space=vmem, size = 0x40000, scoped, tag = 'input window, operand 1']
    #allocation3 [shape = 's32[2]{0}', space=sflag, size = 0x8, scoped, tag = 'scoped memory for tpu_custom_call.1']
    #allocation4 [shape = 's32[2]{0}', space=sflag, size = 0x8, scoped, tag = 'scoped memory for tpu_custom_call.1']
    #allocation5 [shape = 'u8[131072]{0}', space=vmem, size = 0x20000, scoped, tag = 'output window, operand 0']
    #allocation6 [shape = 'u8[262144]{0}', space=vmem, size = 0x40000, scoped, tag = 'output window, operand 1']
    #allocation7 [shape = 's32[2]{0}', space=sflag, size = 0x8, scoped, tag = 'scoped memory for tpu_custom_call.1']
    %13 = vsyncpa [#allocation3], 0
    %s14 = scalar_lea.sflag [#allocation3], 1
    %15 = vsyncpa %s14, 0
    %16 = vsyncpa [#allocation4], 0
    %s17 = scalar_lea.sflag [#allocation4], 1
    %18 = vsyncpa %s17, 0
    %19 = vsyncpa [#allocation7], 0
    %s20 = scalar_lea.sflag [#allocation7], 1
    %21 = vsyncpa %s20, 0
    loop: start=0, step=1, limit=10
    $region2: #{tpu_custom_call.1} parent=1 // loop_pre_header
      _
    $region3: #{tpu_custom_call.1} parent=1 // loop_header
      %s23 = sphi 0, %s27
      %p24 = scmp.ge.s32.totalorder %s23, 10
      %s33 = sphi 0, %s35
      %s36 = sphi 0, %s33
      %s37 = sphi 0, %s36
      %s53 = sphi 0, %s37
      %s59 = sphi 0, %s61
      %s62 = sphi 0, %s59
      %s63 = sphi 0, %s62
      %s79 = sphi 0, %s63
      %s83 = sphi 0, %s83
      %s85 = sphi 0, %s83
      %s86 = sphi 0, %s85
      %s100 = sphi 0, %s86
      %s104 = sphi 0, %s104
      %s106 = sphi 0, %s104
      %s107 = sphi 0, %s106
      %s121 = sphi 0, %s107
      %s125 = sphi 0, %s125
      %s127 = sphi 0, %s125
      %s128 = sphi 0, %s127
      %s142 = sphi 0, %s128
      %s146 = sphi 0, %s146
      %s148 = sphi 0, %s146
      %s149 = sphi 0, %s148
      %s163 = sphi 0, %s149
      %s169 = sphi 0, %s171
      %s172 = sphi 0, %s169
      %s173 = sphi 0, %s172
      %s189 = sphi 0, %s173
      %s195 = sphi 0, %s197
      %s198 = sphi 0, %s195
      %s199 = sphi 0, %s198
      %s215 = sphi 0, %s199
    $region4: #{tpu_custom_call.1} parent=1 // loop_header_branch
      %26 = sbr.rel (%p24) target = $region8
    $region5: #{tpu_custom_call.1} parent=1 // loop_body
      %s28 = ssub.s32 %s23, 1
      %s29 = ssub.s32 %s23, 2
      %s30 = sadd.s32 %s23, 1
      %s31 = ssub.s32 %s23, %s30
      %p32 = scmp.eq.s32.totalorder %s31, 0
      %s34 = sadd.s32 %s33, 1
      %s35 = scalar_select %p32, %s33, %s34
      %p38 = pneg %p32
      %p39 = scmp.eq.s32.totalorder %s23, 7
      %p40 = por %p38, %p39
      %p41 = scmp.ne.s32.totalorder %s33, %s36
      %p42 = scmp.eq.s32.totalorder %s23, 0
      %p43 = por %p41, %p42
      %p44 = scmp.ne.s32.totalorder %s33, %s36
      %p45 = scmp.eq.s32.totalorder %s28, 7
      %p46 = por %p44, %p45
      %p47 = scmp.ne.s32.totalorder %s36, %s37
      %p48 = scmp.eq.s32.totalorder %s28, 0
      %p49 = por %p47, %p48
      %p50 = scmp.ne.s32.totalorder %s36, %s37
      %p51 = scmp.eq.s32.totalorder %s29, 7
      %p52 = por %p50, %p51
      %p54 = scmp.ne.s32.totalorder %s37, %s53
      %p55 = scmp.eq.s32.totalorder %s29, 0
      %p56 = por %p54, %p55
      %s57 = ssub.s32 %s23, %s30
      %p58 = scmp.eq.s32.totalorder %s57, 0
      %s60 = sadd.s32 %s59, 1
      %s61 = scalar_select %p58, %s59, %s60
      %p64 = pneg %p58
      %p65 = scmp.eq.s32.totalorder %s23, 7
      %p66 = por %p64, %p65
      %p67 = scmp.ne.s32.totalorder %s59, %s62
      %p68 = scmp.eq.s32.totalorder %s23, 0
      %p69 = por %p67, %p68
      %p70 = scmp.ne.s32.totalorder %s59, %s62
      %p71 = scmp.eq.s32.totalorder %s28, 7
      %p72 = por %p70, %p71
      %p73 = scmp.ne.s32.totalorder %s62, %s63
      %p74 = scmp.eq.s32.totalorder %s28, 0
      %p75 = por %p73, %p74
      %p76 = scmp.ne.s32.totalorder %s62, %s63
      %p77 = scmp.eq.s32.totalorder %s29, 7
      %p78 = por %p76, %p77
      %p80 = scmp.ne.s32.totalorder %s63, %s79
      %p81 = scmp.eq.s32.totalorder %s29, 0
      %p82 = por %p80, %p81
      %s84 = sadd.s32 %s83, 1
      %p87 = scmp.eq.s32.totalorder %s23, 7
      %p88 = scmp.ne.s32.totalorder %s83, %s85
      %p89 = scmp.eq.s32.totalorder %s23, 0
      %p90 = por %p88, %p89
      %p91 = scmp.ne.s32.totalorder %s83, %s85
      %p92 = scmp.eq.s32.totalorder %s28, 7
      %p93 = por %p91, %p92
      %p94 = scmp.ne.s32.totalorder %s85, %s86
      %p95 = scmp.eq.s32.totalorder %s28, 0
      %p96 = por %p94, %p95
      %p97 = scmp.ne.s32.totalorder %s85, %s86
      %p98 = scmp.eq.s32.totalorder %s29, 7
      %p99 = por %p97, %p98
      %p101 = scmp.ne.s32.totalorder %s86, %s100
      %p102 = scmp.eq.s32.totalorder %s29, 0
      %p103 = por %p101, %p102
      %s105 = sadd.s32 %s104, 1
      %p108 = scmp.eq.s32.totalorder %s23, 7
      %p109 = scmp.ne.s32.totalorder %s104, %s106
      %p110 = scmp.eq.s32.totalorder %s23, 0
      %p111 = por %p109, %p110
      %p112 = scmp.ne.s32.totalorder %s104, %s106
      %p113 = scmp.eq.s32.totalorder %s28, 7
      %p114 = por %p112, %p113
      %p115 = scmp.ne.s32.totalorder %s106, %s107
      %p116 = scmp.eq.s32.totalorder %s28, 0
      %p117 = por %p115, %p116
      %p118 = scmp.ne.s32.totalorder %s106, %s107
      %p119 = scmp.eq.s32.totalorder %s29, 7
      %p120 = por %p118, %p119
      %p122 = scmp.ne.s32.totalorder %s107, %s121
      %p123 = scmp.eq.s32.totalorder %s29, 0
      %p124 = por %p122, %p123
      %s126 = sadd.s32 %s125, 1
      %p129 = scmp.eq.s32.totalorder %s23, 7
      %p130 = scmp.ne.s32.totalorder %s125, %s127
      %p131 = scmp.eq.s32.totalorder %s23, 0
      %p132 = por %p130, %p131
      %p133 = scmp.ne.s32.totalorder %s125, %s127
      %p134 = scmp.eq.s32.totalorder %s28, 7
      %p135 = por %p133, %p134
      %p136 = scmp.ne.s32.totalorder %s127, %s128
      %p137 = scmp.eq.s32.totalorder %s28, 0
      %p138 = por %p136, %p137
      %p139 = scmp.ne.s32.totalorder %s127, %s128
      %p140 = scmp.eq.s32.totalorder %s29, 7
      %p141 = por %p139, %p140
      %p143 = scmp.ne.s32.totalorder %s128, %s142
      %p144 = scmp.eq.s32.totalorder %s29, 0
      %p145 = por %p143, %p144
      %s147 = sadd.s32 %s146, 1
      %p150 = scmp.eq.s32.totalorder %s23, 7
      %p151 = scmp.ne.s32.totalorder %s146, %s148
      %p152 = scmp.eq.s32.totalorder %s23, 0
      %p153 = por %p151, %p152
      %p154 = scmp.ne.s32.totalorder %s146, %s148
      %p155 = scmp.eq.s32.totalorder %s28, 7
      %p156 = por %p154, %p155
      %p157 = scmp.ne.s32.totalorder %s148, %s149
      %p158 = scmp.eq.s32.totalorder %s28, 0
      %p159 = por %p157, %p158
      %p160 = scmp.ne.s32.totalorder %s148, %s149
      %p161 = scmp.eq.s32.totalorder %s29, 7
      %p162 = por %p160, %p161
      %p164 = scmp.ne.s32.totalorder %s149, %s163
      %p165 = scmp.eq.s32.totalorder %s29, 0
      %p166 = por %p164, %p165
      %s167 = ssub.s32 %s23, %s30
      %p168 = scmp.eq.s32.totalorder %s167, 0
      %s170 = sadd.s32 %s169, 1
      %s171 = scalar_select %p168, %s169, %s170
      %p174 = pneg %p168
      %p175 = scmp.eq.s32.totalorder %s23, 7
      %p176 = por %p174, %p175
      %p177 = scmp.ne.s32.totalorder %s169, %s172
      %p178 = scmp.eq.s32.totalorder %s23, 0
      %p179 = por %p177, %p178
      %p180 = scmp.ne.s32.totalorder %s169, %s172
      %p181 = scmp.eq.s32.totalorder %s28, 7
      %p182 = por %p180, %p181
      %p183 = scmp.ne.s32.totalorder %s172, %s173
      %p184 = scmp.eq.s32.totalorder %s28, 0
      %p185 = por %p183, %p184
      %p186 = scmp.ne.s32.totalorder %s172, %s173
      %p187 = scmp.eq.s32.totalorder %s29, 7
      %p188 = por %p186, %p187
      %p190 = scmp.ne.s32.totalorder %s173, %s189
      %p191 = scmp.eq.s32.totalorder %s29, 0
      %p192 = por %p190, %p191
      %s193 = ssub.s32 %s23, %s30
      %p194 = scmp.eq.s32.totalorder %s193, 0
      %s196 = sadd.s32 %s195, 1
      %s197 = scalar_select %p194, %s195, %s196
      %p200 = pneg %p194
      %p201 = scmp.eq.s32.totalorder %s23, 7
      %p202 = por %p200, %p201
      %p203 = scmp.ne.s32.totalorder %s195, %s198
      %p204 = scmp.eq.s32.totalorder %s23, 0
      %p205 = por %p203, %p204
      %p206 = scmp.ne.s32.totalorder %s195, %s198
      %p207 = scmp.eq.s32.totalorder %s28, 7
      %p208 = por %p206, %p207
      %p209 = scmp.ne.s32.totalorder %s198, %s199
      %p210 = scmp.eq.s32.totalorder %s28, 0
      %p211 = por %p209, %p210
      %p212 = scmp.ne.s32.totalorder %s198, %s199
      %p213 = scmp.eq.s32.totalorder %s29, 7
      %p214 = por %p212, %p213
      %p216 = scmp.ne.s32.totalorder %s199, %s215
      %p217 = scmp.eq.s32.totalorder %s29, 0
      %p218 = por %p216, %p217
      %p219 = scmp.le.s32.totalorder 1, %s23
      %p220 = scmp.lt.s32.totalorder %s23, 9
      %p221 = pnand %p219, %p220
      %p222 = pneg %p221
      // Predicated region
      $region9: #{tpu_custom_call.1} parent=5 // pred_check
        _
      $region10: #{tpu_custom_call.1} parent=5 // pred_check_branch
        %224 = sbr.rel (%p221) target = $region12
      $region11: #{tpu_custom_call.1} parent=5 // pred_region
        %s225 = ssub.s32 %s23, 1
        // Predicated region
        $region13: #{tpu_custom_call.1} parent=11 // pred_check
          %p226 = pneg %p96
        $region14: #{tpu_custom_call.1} parent=11 // pred_check_branch
          %228 = sbr.rel (%p226) target = $region16
        $region15: #{tpu_custom_call.1} parent=11 // pred_region
          _
        $region16: #{tpu_custom_call.1} parent=11 // pred_fallthru
          _
        // Predicated region
        $region17: #{tpu_custom_call.1} parent=11 // pred_check
          %p229 = pneg %p117
        $region18: #{tpu_custom_call.1} parent=11 // pred_check_branch
          %231 = sbr.rel (%p229) target = $region20
        $region19: #{tpu_custom_call.1} parent=11 // pred_region
          _
        $region20: #{tpu_custom_call.1} parent=11 // pred_fallthru
          _
        // Predicated region
        $region21: #{tpu_custom_call.1} parent=11 // pred_check
          %p232 = pneg %p138
        $region22: #{tpu_custom_call.1} parent=11 // pred_check_branch
          %234 = sbr.rel (%p232) target = $region24
        $region23: #{tpu_custom_call.1} parent=11 // pred_region
          _
        $region24: #{tpu_custom_call.1} parent=11 // pred_fallthru
          _
        // Predicated region
        $region25: #{tpu_custom_call.1} parent=11 // pred_check
          %p235 = pneg %p159
        $region26: #{tpu_custom_call.1} parent=11 // pred_check_branch
          %237 = sbr.rel (%p235) target = $region28
        $region27: #{tpu_custom_call.1} parent=11 // pred_region
          _
        $region28: #{tpu_custom_call.1} parent=11 // pred_fallthru
          _
      $region12: #{tpu_custom_call.1} parent=5 // pred_fallthru
        _
      %p238 = scmp.lt.s32.totalorder %s23, 8
      // Predicated region
      $region29: #{tpu_custom_call.1} parent=5 // pred_check
        %p239 = pneg %p238
      $region30: #{tpu_custom_call.1} parent=5 // pred_check_branch
        %241 = sbr.rel (%p239) target = $region32
      $region31: #{tpu_custom_call.1} parent=5 // pred_region
        // Predicated region
        $region33: #{tpu_custom_call.1} parent=31 // pred_check
          %p242 = pneg %p43
        $region34: #{tpu_custom_call.1} parent=31 // pred_check_branch
          %244 = sbr.rel (%p242) target = $region36
        $region35: #{tpu_custom_call.1} parent=31 // pred_region
          %s245 = smul.u32 32, %s23
          %p246 = scmp.lt.s32.totalorder %s245, 255
          %s247 = scalar_select %p246, %s245, 255
          %s248 = smul.addr %s247, 4
          %s249 = scalar_lea.vmem %s0, %s248
          %s250 = smul.u32 32, %s23
        $region36: #{tpu_custom_call.1} parent=31 // pred_fallthru
          _
        // Predicated region
        $region37: #{tpu_custom_call.1} parent=31 // pred_check
          %p251 = pneg %p69
        $region38: #{tpu_custom_call.1} parent=31 // pred_check_branch
          %253 = sbr.rel (%p251) target = $region40
        $region39: #{tpu_custom_call.1} parent=31 // pred_region
          %s254 = sand.u32 %s59, 1
          %s255 = scalar_lea.sflag [#allocation3], %s254
          %s256 = sand.u32 %s59, 1
          %s257 = smul.addr %s256, 256
          %s258 = scalar_lea.vmem [#allocation2], %s257
          %s259 = smul.u32 32, %s23
          %261 = vsyncadd %s255, 0
          %s262 = smul.addr %s259, 8
          %s263 = scalar_lea.hbm %s1, %s262
          %s264 = sshll.u32 %s263, 4
          %s265 = int_to_ptr.hbm [resolvable:$true] %s264
          %s266 = sshll.u32 %s258, 4
          %s267 = int_to_ptr.vmem [resolvable:$true] %s266
          %272 = dma.hbm_to_vmem [thread:$0]  %s265, 4096, %s267, %s255, 128, 128, 8
        $region40: #{tpu_custom_call.1} parent=31 // pred_fallthru
          _
      $region32: #{tpu_custom_call.1} parent=5 // pred_fallthru
        _
      %p273 = scmp.le.s32.totalorder 1, %s23
      %p274 = scmp.lt.s32.totalorder %s23, 9
      %p275 = pnand %p273, %p274
      %p276 = pneg %p275
      // Predicated region
      $region41: #{tpu_custom_call.1} parent=5 // pred_check
        _
      $region42: #{tpu_custom_call.1} parent=5 // pred_check_branch
        %278 = sbr.rel (%p275) target = $region44
      $region43: #{tpu_custom_call.1} parent=5 // pred_region
        %s279 = ssub.s32 %s23, 1
        %s280 = sand.u32 %s62, 1
        %s281 = scalar_lea.sflag [#allocation3], %s280
        %s282 = sand.u32 %s62, 1
        %s283 = smul.addr %s282, 256
        %s284 = scalar_lea.vmem [#allocation2], %s283
        // Predicated region
        $region45: #{tpu_custom_call.1} parent=43 // pred_check
          %p285 = pneg %p75
        $region46: #{tpu_custom_call.1} parent=43 // pred_check_branch
          %287 = sbr.rel (%p285) target = $region48
        $region47: #{tpu_custom_call.1} parent=43 // pred_region
          %289 = dma.done %s281, 4096
        $region48: #{tpu_custom_call.1} parent=43 // pred_fallthru
          _
        %s290 = smul.u32 32, %s28
        %p291 = scmp.lt.s32.totalorder %s290, 255
        %s292 = scalar_select %p291, %s290, 255
        %s293 = smul.addr %s292, 4
        %s294 = scalar_lea.vmem %s0, %s293
        %p295 = pneg %p49
        %p296 = pneg %p46
        %s297 = sand.u32 %s62, 1
        %s298 = scalar_lea.sflag [#allocation3], %s297
        %s299 = sand.u32 %s62, 1
        %s300 = smul.addr %s299, 256
        %s301 = scalar_lea.vmem [#allocation2], %s300
        %p302 = pneg %p75
        %p303 = pneg %p72
        %p304 = pneg %p96
        %p305 = pneg %p93
        %p306 = pneg %p117
        %p307 = pneg %p114
        %p308 = pneg %p138
        %p309 = pneg %p135
        %p310 = pneg %p159
        %p311 = pneg %p156
        %p312 = pneg %p185
        %p313 = pneg %p182
        %s314 = sand.u32 %s172, 1
        %s315 = scalar_lea.sflag [#allocation4], %s314
        %s316 = sand.u32 %s172, 1
        %s317 = smul.addr %s316, 128
        %s318 = scalar_lea.vmem [#allocation5], %s317
        %p319 = pneg %p211
        %p320 = pneg %p208
        %s321 = sand.u32 %s198, 1
        %s322 = scalar_lea.sflag [#allocation7], %s321
        %s323 = sand.u32 %s198, 1
        %s324 = smul.addr %s323, 256
        %s325 = scalar_lea.vmem [#allocation6], %s324
        %s326 = smul.u32 32, %s28
        %p327 = scmp.lt.s32.totalorder %s326, 255
        %s328 = scalar_select %p327, %s326, 255
        %s329 = smul.addr %s328, 4
        %s330 = scalar_lea.vmem %s0, %s329
        %s331 = smul.u32 32, %s28
        %s332 = smul.u32 32, %s28
        %s333 = smul.u32 32, %s28
        %s334 = smul.u32 32, %s28
        %v335 = vld [vmem:[%s330] sm:$0xf]
        %v336 = vld [vmem:[%s330 + $0x4] sm:$0xf]
        %v337 = vld [vmem:[%s330 + $0x8] sm:$0xf]
        %v338 = vld [vmem:[%s330 + $0xc] sm:$0xf]
        %v339 = vld [vmem:[%s330 + $0x10] sm:$0xf]
        %v340 = vld [vmem:[%s330 + $0x14] sm:$0xf]
        %v341 = vld [vmem:[%s330 + $0x18] sm:$0xf]
        %v342 = vld [vmem:[%s330 + $0x1c] sm:$0xf]
        %v343 = vld [vmem:[%s330 + $0x20] sm:$0xf]
        %v344 = vld [vmem:[%s330 + $0x24] sm:$0xf]
        %v345 = vld [vmem:[%s330 + $0x28] sm:$0xf]
        %v346 = vld [vmem:[%s330 + $0x2c] sm:$0xf]
        %v347 = vld [vmem:[%s330 + $0x30] sm:$0xf]
        %v348 = vld [vmem:[%s330 + $0x34] sm:$0xf]
        %v349 = vld [vmem:[%s330 + $0x38] sm:$0xf]
        %v350 = vld [vmem:[%s330 + $0x3c] sm:$0xf]
        %v351 = vld [vmem:[%s330 + $0x40] sm:$0xf]
        %v352 = vld [vmem:[%s330 + $0x44] sm:$0xf]
        %v353 = vld [vmem:[%s330 + $0x48] sm:$0xf]
        %v354 = vld [vmem:[%s330 + $0x4c] sm:$0xf]
        %v355 = vld [vmem:[%s330 + $0x50] sm:$0xf]
        %v356 = vld [vmem:[%s330 + $0x54] sm:$0xf]
        %v357 = vld [vmem:[%s330 + $0x58] sm:$0xf]
        %v358 = vld [vmem:[%s330 + $0x5c] sm:$0xf]
        %v359 = vld [vmem:[%s330 + $0x60] sm:$0xf]
        %v360 = vld [vmem:[%s330 + $0x64] sm:$0xf]
        %v361 = vld [vmem:[%s330 + $0x68] sm:$0xf]
        %v362 = vld [vmem:[%s330 + $0x6c] sm:$0xf]
        %v363 = vld [vmem:[%s330 + $0x70] sm:$0xf]
        %v364 = vld [vmem:[%s330 + $0x74] sm:$0xf]
        %v365 = vld [vmem:[%s330 + $0x78] sm:$0xf]
        %v366 = vld [vmem:[%s330 + $0x7c] sm:$0xf]
        %v367 = vunpack.c.l.bf16 %v335
        %v368 = vunpack.c.l.bf16 %v336
        %v369 = vunpack.c.l.bf16 %v337
        %v370 = vunpack.c.l.bf16 %v338
        %v371 = vunpack.c.l.bf16 %v339
        %v372 = vunpack.c.l.bf16 %v340
        %v373 = vunpack.c.l.bf16 %v341
        %v374 = vunpack.c.l.bf16 %v342
        %v375 = vunpack.c.l.bf16 %v343
        %v376 = vunpack.c.l.bf16 %v344
        %v377 = vunpack.c.l.bf16 %v345
        %v378 = vunpack.c.l.bf16 %v346
        %v379 = vunpack.c.l.bf16 %v347
        %v380 = vunpack.c.l.bf16 %v348
        %v381 = vunpack.c.l.bf16 %v349
        %v382 = vunpack.c.l.bf16 %v350
        %v383 = vunpack.c.l.bf16 %v351
        %v384 = vunpack.c.l.bf16 %v352
        %v385 = vunpack.c.l.bf16 %v353
        %v386 = vunpack.c.l.bf16 %v354
        %v387 = vunpack.c.l.bf16 %v355
        %v388 = vunpack.c.l.bf16 %v356
        %v389 = vunpack.c.l.bf16 %v357
        %v390 = vunpack.c.l.bf16 %v358
        %v391 = vunpack.c.l.bf16 %v359
        %v392 = vunpack.c.l.bf16 %v360
        %v393 = vunpack.c.l.bf16 %v361
        %v394 = vunpack.c.l.bf16 %v362
        %v395 = vunpack.c.l.bf16 %v363
        %v396 = vunpack.c.l.bf16 %v364
        %v397 = vunpack.c.l.bf16 %v365
        %v398 = vunpack.c.l.bf16 %v366
        %v399 = vld [vmem:[%s284] sm:$0xff]
        %v400 = vld [vmem:[%s284 + $0x8] sm:$0xff]
        %v401 = vld [vmem:[%s284 + $0x10] sm:$0xff]
        %v402 = vld [vmem:[%s284 + $0x18] sm:$0xff]
        %v403 = vld [vmem:[%s284 + $0x20] sm:$0xff]
        %v404 = vld [vmem:[%s284 + $0x28] sm:$0xff]
        %v405 = vld [vmem:[%s284 + $0x30] sm:$0xff]
        %v406 = vld [vmem:[%s284 + $0x38] sm:$0xff]
        %v407 = vld [vmem:[%s284 + $0x40] sm:$0xff]
        %v408 = vld [vmem:[%s284 + $0x48] sm:$0xff]
        %v409 = vld [vmem:[%s284 + $0x50] sm:$0xff]
        %v410 = vld [vmem:[%s284 + $0x58] sm:$0xff]
        %v411 = vld [vmem:[%s284 + $0x60] sm:$0xff]
        %v412 = vld [vmem:[%s284 + $0x68] sm:$0xff]
        %v413 = vld [vmem:[%s284 + $0x70] sm:$0xff]
        %v414 = vld [vmem:[%s284 + $0x78] sm:$0xff]
        %v415 = vld [vmem:[%s284 + $0x80] sm:$0xff]
        %v416 = vld [vmem:[%s284 + $0x88] sm:$0xff]
        %v417 = vld [vmem:[%s284 + $0x90] sm:$0xff]
        %v418 = vld [vmem:[%s284 + $0x98] sm:$0xff]
        %v419 = vld [vmem:[%s284 + $0xa0] sm:$0xff]
        %v420 = vld [vmem:[%s284 + $0xa8] sm:$0xff]
        %v421 = vld [vmem:[%s284 + $0xb0] sm:$0xff]
        %v422 = vld [vmem:[%s284 + $0xb8] sm:$0xff]
        %v423 = vld [vmem:[%s284 + $0xc0] sm:$0xff]
        %v424 = vld [vmem:[%s284 + $0xc8] sm:$0xff]
        %v425 = vld [vmem:[%s284 + $0xd0] sm:$0xff]
        %v426 = vld [vmem:[%s284 + $0xd8] sm:$0xff]
        %v427 = vld [vmem:[%s284 + $0xe0] sm:$0xff]
        %v428 = vld [vmem:[%s284 + $0xe8] sm:$0xff]
        %v429 = vld [vmem:[%s284 + $0xf0] sm:$0xff]
        %v430 = vld [vmem:[%s284 + $0xf8] sm:$0xff]
        %v431 = vadd.f32 %v367, %v399
        %v432 = vadd.f32 %v368, %v400
        %v433 = vadd.f32 %v369, %v401
        %v434 = vadd.f32 %v370, %v402
        %v435 = vadd.f32 %v371, %v403
        %v436 = vadd.f32 %v372, %v404
        %v437 = vadd.f32 %v373, %v405
        %v438 = vadd.f32 %v374, %v406
        %v439 = vadd.f32 %v375, %v407
        %v440 = vadd.f32 %v376, %v408
        %v441 = vadd.f32 %v377, %v409
        %v442 = vadd.f32 %v378, %v410
        %v443 = vadd.f32 %v379, %v411
        %v444 = vadd.f32 %v380, %v412
        %v445 = vadd.f32 %v381, %v413
        %v446 = vadd.f32 %v382, %v414
        %v447 = vadd.f32 %v383, %v415
        %v448 = vadd.f32 %v384, %v416
        %v449 = vadd.f32 %v385, %v417
        %v450 = vadd.f32 %v386, %v418
        %v451 = vadd.f32 %v387, %v419
        %v452 = vadd.f32 %v388, %v420
        %v453 = vadd.f32 %v389, %v421
        %v454 = vadd.f32 %v390, %v422
        %v455 = vadd.f32 %v391, %v423
        %v456 = vadd.f32 %v392, %v424
        %v457 = vadd.f32 %v393, %v425
        %v458 = vadd.f32 %v394, %v426
        %v459 = vadd.f32 %v395, %v427
        %v460 = vadd.f32 %v396, %v428
        %v461 = vadd.f32 %v397, %v429
        %v462 = vadd.f32 %v398, %v430
        %463 = vst [vmem:[%s325] sm:$0xff] %v431
        %464 = vst [vmem:[%s325 + $0x8] sm:$0xff] %v432
        %465 = vst [vmem:[%s325 + $0x10] sm:$0xff] %v433
        %466 = vst [vmem:[%s325 + $0x18] sm:$0xff] %v434
        %467 = vst [vmem:[%s325 + $0x20] sm:$0xff] %v435
        %468 = vst [vmem:[%s325 + $0x28] sm:$0xff] %v436
        %469 = vst [vmem:[%s325 + $0x30] sm:$0xff] %v437
        %470 = vst [vmem:[%s325 + $0x38] sm:$0xff] %v438
        %471 = vst [vmem:[%s325 + $0x40] sm:$0xff] %v439
        %472 = vst [vmem:[%s325 + $0x48] sm:$0xff] %v440
        %473 = vst [vmem:[%s325 + $0x50] sm:$0xff] %v441
        %474 = vst [vmem:[%s325 + $0x58] sm:$0xff] %v442
        %475 = vst [vmem:[%s325 + $0x60] sm:$0xff] %v443
        %476 = vst [vmem:[%s325 + $0x68] sm:$0xff] %v444
        %477 = vst [vmem:[%s325 + $0x70] sm:$0xff] %v445
        %478 = vst [vmem:[%s325 + $0x78] sm:$0xff] %v446
        %479 = vst [vmem:[%s325 + $0x80] sm:$0xff] %v447
        %480 = vst [vmem:[%s325 + $0x88] sm:$0xff] %v448
        %481 = vst [vmem:[%s325 + $0x90] sm:$0xff] %v449
        %482 = vst [vmem:[%s325 + $0x98] sm:$0xff] %v450
        %483 = vst [vmem:[%s325 + $0xa0] sm:$0xff] %v451
        %484 = vst [vmem:[%s325 + $0xa8] sm:$0xff] %v452
        %485 = vst [vmem:[%s325 + $0xb0] sm:$0xff] %v453
        %486 = vst [vmem:[%s325 + $0xb8] sm:$0xff] %v454
        %487 = vst [vmem:[%s325 + $0xc0] sm:$0xff] %v455
        %488 = vst [vmem:[%s325 + $0xc8] sm:$0xff] %v456
        %489 = vst [vmem:[%s325 + $0xd0] sm:$0xff] %v457
        %490 = vst [vmem:[%s325 + $0xd8] sm:$0xff] %v458
        %491 = vst [vmem:[%s325 + $0xe0] sm:$0xff] %v459
        %492 = vst [vmem:[%s325 + $0xe8] sm:$0xff] %v460
        %493 = vst [vmem:[%s325 + $0xf0] sm:$0xff] %v461
        %494 = vst [vmem:[%s325 + $0xf8] sm:$0xff] %v462
        %495 = vadd.xlane.f32.xlu0 %v431
        %v496 = vpop.xlane.xlu0 %495
        %497 = vadd.xlane.f32.xlu0 %v432
        %v498 = vpop.xlane.xlu0 %497
        %499 = vadd.xlane.f32.xlu0 %v433
        %v500 = vpop.xlane.xlu0 %499
        %501 = vadd.xlane.f32.xlu0 %v434
        %v502 = vpop.xlane.xlu0 %501
        %503 = vadd.xlane.f32.xlu0 %v435
        %v504 = vpop.xlane.xlu0 %503
        %505 = vadd.xlane.f32.xlu0 %v436
        %v506 = vpop.xlane.xlu0 %505
        %507 = vadd.xlane.f32.xlu0 %v437
        %v508 = vpop.xlane.xlu0 %507
        %509 = vadd.xlane.f32.xlu0 %v438
        %v510 = vpop.xlane.xlu0 %509
        %511 = vadd.xlane.f32.xlu0 %v439
        %v512 = vpop.xlane.xlu0 %511
        %513 = vadd.xlane.f32.xlu0 %v440
        %v514 = vpop.xlane.xlu0 %513
        %515 = vadd.xlane.f32.xlu0 %v441
        %v516 = vpop.xlane.xlu0 %515
        %517 = vadd.xlane.f32.xlu0 %v442
        %v518 = vpop.xlane.xlu0 %517
        %519 = vadd.xlane.f32.xlu0 %v443
        %v520 = vpop.xlane.xlu0 %519
        %521 = vadd.xlane.f32.xlu0 %v444
        %v522 = vpop.xlane.xlu0 %521
        %523 = vadd.xlane.f32.xlu0 %v445
        %v524 = vpop.xlane.xlu0 %523
        %525 = vadd.xlane.f32.xlu0 %v446
        %v526 = vpop.xlane.xlu0 %525
        %527 = vadd.xlane.f32.xlu0 %v447
        %v528 = vpop.xlane.xlu0 %527
        %529 = vadd.xlane.f32.xlu0 %v448
        %v530 = vpop.xlane.xlu0 %529
        %531 = vadd.xlane.f32.xlu0 %v449
        %v532 = vpop.xlane.xlu0 %531
        %533 = vadd.xlane.f32.xlu0 %v450
        %v534 = vpop.xlane.xlu0 %533
        %535 = vadd.xlane.f32.xlu0 %v451
        %v536 = vpop.xlane.xlu0 %535
        %537 = vadd.xlane.f32.xlu0 %v452
        %v538 = vpop.xlane.xlu0 %537
        %539 = vadd.xlane.f32.xlu0 %v453
        %v540 = vpop.xlane.xlu0 %539
        %541 = vadd.xlane.f32.xlu0 %v454
        %v542 = vpop.xlane.xlu0 %541
        %543 = vadd.xlane.f32.xlu0 %v455
        %v544 = vpop.xlane.xlu0 %543
        %545 = vadd.xlane.f32.xlu0 %v456
        %v546 = vpop.xlane.xlu0 %545
        %547 = vadd.xlane.f32.xlu0 %v457
        %v548 = vpop.xlane.xlu0 %547
        %549 = vadd.xlane.f32.xlu0 %v458
        %v550 = vpop.xlane.xlu0 %549
        %551 = vadd.xlane.f32.xlu0 %v459
        %v552 = vpop.xlane.xlu0 %551
        %553 = vadd.xlane.f32.xlu0 %v460
        %v554 = vpop.xlane.xlu0 %553
        %555 = vadd.xlane.f32.xlu0 %v461
        %v556 = vpop.xlane.xlu0 %555
        %557 = vadd.xlane.f32.xlu0 %v462
        %v558 = vpop.xlane.xlu0 %557
        %v559 = vmul.f32 %v496, 0.0078125
        %v560 = vmul.f32 %v498, 0.0078125
        %v561 = vmul.f32 %v500, 0.0078125
        %v562 = vmul.f32 %v502, 0.0078125
        %v563 = vmul.f32 %v504, 0.0078125
        %v564 = vmul.f32 %v506, 0.0078125
        %v565 = vmul.f32 %v508, 0.0078125
        %v566 = vmul.f32 %v510, 0.0078125
        %v567 = vmul.f32 %v512, 0.0078125
        %v568 = vmul.f32 %v514, 0.0078125
        %v569 = vmul.f32 %v516, 0.0078125
        %v570 = vmul.f32 %v518, 0.0078125
        %v571 = vmul.f32 %v520, 0.0078125
        %v572 = vmul.f32 %v522, 0.0078125
        %v573 = vmul.f32 %v524, 0.0078125
        %v574 = vmul.f32 %v526, 0.0078125
        %v575 = vmul.f32 %v528, 0.0078125
        %v576 = vmul.f32 %v530, 0.0078125
        %v577 = vmul.f32 %v532, 0.0078125
        %v578 = vmul.f32 %v534, 0.0078125
        %v579 = vmul.f32 %v536, 0.0078125
        %v580 = vmul.f32 %v538, 0.0078125
        %v581 = vmul.f32 %v540, 0.0078125
        %v582 = vmul.f32 %v542, 0.0078125
        %v583 = vmul.f32 %v544, 0.0078125
        %v584 = vmul.f32 %v546, 0.0078125
        %v585 = vmul.f32 %v548, 0.0078125
        %v586 = vmul.f32 %v550, 0.0078125
        %v587 = vmul.f32 %v552, 0.0078125
        %v588 = vmul.f32 %v554, 0.0078125
        %v589 = vmul.f32 %v556, 0.0078125
        %v590 = vmul.f32 %v558, 0.0078125
        %v591 = vmul.f32 %v431, %v431
        %v592 = vmul.f32 %v432, %v432
        %v593 = vmul.f32 %v433, %v433
        %v594 = vmul.f32 %v434, %v434
        %v595 = vmul.f32 %v435, %v435
        %v596 = vmul.f32 %v436, %v436
        %v597 = vmul.f32 %v437, %v437
        %v598 = vmul.f32 %v438, %v438
        %v599 = vmul.f32 %v439, %v439
        %v600 = vmul.f32 %v440, %v440
        %v601 = vmul.f32 %v441, %v441
        %v602 = vmul.f32 %v442, %v442
        %v603 = vmul.f32 %v443, %v443
        %v604 = vmul.f32 %v444, %v444
        %v605 = vmul.f32 %v445, %v445
        %v606 = vmul.f32 %v446, %v446
        %v607 = vmul.f32 %v447, %v447
        %v608 = vmul.f32 %v448, %v448
        %v609 = vmul.f32 %v449, %v449
        %v610 = vmul.f32 %v450, %v450
        %v611 = vmul.f32 %v451, %v451
        %v612 = vmul.f32 %v452, %v452
        %v613 = vmul.f32 %v453, %v453
        %v614 = vmul.f32 %v454, %v454
        %v615 = vmul.f32 %v455, %v455
        %v616 = vmul.f32 %v456, %v456
        %v617 = vmul.f32 %v457, %v457
        %v618 = vmul.f32 %v458, %v458
        %v619 = vmul.f32 %v459, %v459
        %v620 = vmul.f32 %v460, %v460
        %v621 = vmul.f32 %v461, %v461
        %v622 = vmul.f32 %v462, %v462
        %623 = vadd.xlane.f32.xlu0 %v591
        %v624 = vpop.xlane.xlu0 %623
        %625 = vadd.xlane.f32.xlu0 %v592
        %v626 = vpop.xlane.xlu0 %625
        %627 = vadd.xlane.f32.xlu0 %v593
        %v628 = vpop.xlane.xlu0 %627
        %629 = vadd.xlane.f32.xlu0 %v594
        %v630 = vpop.xlane.xlu0 %629
        %631 = vadd.xlane.f32.xlu0 %v595
        %v632 = vpop.xlane.xlu0 %631
        %633 = vadd.xlane.f32.xlu0 %v596
        %v634 = vpop.xlane.xlu0 %633
        %635 = vadd.xlane.f32.xlu0 %v597
        %v636 = vpop.xlane.xlu0 %635
        %637 = vadd.xlane.f32.xlu0 %v598
        %v638 = vpop.xlane.xlu0 %637
        %639 = vadd.xlane.f32.xlu0 %v599
        %v640 = vpop.xlane.xlu0 %639
        %641 = vadd.xlane.f32.xlu0 %v600
        %v642 = vpop.xlane.xlu0 %641
        %643 = vadd.xlane.f32.xlu0 %v601
        %v644 = vpop.xlane.xlu0 %643
        %645 = vadd.xlane.f32.xlu0 %v602
        %v646 = vpop.xlane.xlu0 %645
        %647 = vadd.xlane.f32.xlu0 %v603
        %v648 = vpop.xlane.xlu0 %647
        %649 = vadd.xlane.f32.xlu0 %v604
        %v650 = vpop.xlane.xlu0 %649
        %651 = vadd.xlane.f32.xlu0 %v605
        %v652 = vpop.xlane.xlu0 %651
        %653 = vadd.xlane.f32.xlu0 %v606
        %v654 = vpop.xlane.xlu0 %653
        %655 = vadd.xlane.f32.xlu0 %v607
        %v656 = vpop.xlane.xlu0 %655
        %657 = vadd.xlane.f32.xlu0 %v608
        %v658 = vpop.xlane.xlu0 %657
        %659 = vadd.xlane.f32.xlu0 %v609
        %v660 = vpop.xlane.xlu0 %659
        %661 = vadd.xlane.f32.xlu0 %v610
        %v662 = vpop.xlane.xlu0 %661
        %663 = vadd.xlane.f32.xlu0 %v611
        %v664 = vpop.xlane.xlu0 %663
        %665 = vadd.xlane.f32.xlu0 %v612
        %v666 = vpop.xlane.xlu0 %665
        %667 = vadd.xlane.f32.xlu0 %v613
        %v668 = vpop.xlane.xlu0 %667
        %669 = vadd.xlane.f32.xlu0 %v614
        %v670 = vpop.xlane.xlu0 %669
        %671 = vadd.xlane.f32.xlu0 %v615
        %v672 = vpop.xlane.xlu0 %671
        %673 = vadd.xlane.f32.xlu0 %v616
        %v674 = vpop.xlane.xlu0 %673
        %675 = vadd.xlane.f32.xlu0 %v617
        %v676 = vpop.xlane.xlu0 %675
        %677 = vadd.xlane.f32.xlu0 %v618
        %v678 = vpop.xlane.xlu0 %677
        %679 = vadd.xlane.f32.xlu0 %v619
        %v680 = vpop.xlane.xlu0 %679
        %681 = vadd.xlane.f32.xlu0 %v620
        %v682 = vpop.xlane.xlu0 %681
        %683 = vadd.xlane.f32.xlu0 %v621
        %v684 = vpop.xlane.xlu0 %683
        %685 = vadd.xlane.f32.xlu0 %v622
        %v686 = vpop.xlane.xlu0 %685
        %v687 = vmul.f32 %v624, 0.0078125
        %v688 = vmul.f32 %v626, 0.0078125
        %v689 = vmul.f32 %v628, 0.0078125
        %v690 = vmul.f32 %v630, 0.0078125
        %v691 = vmul.f32 %v632, 0.0078125
        %v692 = vmul.f32 %v634, 0.0078125
        %v693 = vmul.f32 %v636, 0.0078125
        %v694 = vmul.f32 %v638, 0.0078125
        %v695 = vmul.f32 %v640, 0.0078125
        %v696 = vmul.f32 %v642, 0.0078125
        %v697 = vmul.f32 %v644, 0.0078125
        %v698 = vmul.f32 %v646, 0.0078125
        %v699 = vmul.f32 %v648, 0.0078125
        %v700 = vmul.f32 %v650, 0.0078125
        %v701 = vmul.f32 %v652, 0.0078125
        %v702 = vmul.f32 %v654, 0.0078125
        %v703 = vmul.f32 %v656, 0.0078125
        %v704 = vmul.f32 %v658, 0.0078125
        %v705 = vmul.f32 %v660, 0.0078125
        %v706 = vmul.f32 %v662, 0.0078125
        %v707 = vmul.f32 %v664, 0.0078125
        %v708 = vmul.f32 %v666, 0.0078125
        %v709 = vmul.f32 %v668, 0.0078125
        %v710 = vmul.f32 %v670, 0.0078125
        %v711 = vmul.f32 %v672, 0.0078125
        %v712 = vmul.f32 %v674, 0.0078125
        %v713 = vmul.f32 %v676, 0.0078125
        %v714 = vmul.f32 %v678, 0.0078125
        %v715 = vmul.f32 %v680, 0.0078125
        %v716 = vmul.f32 %v682, 0.0078125
        %v717 = vmul.f32 %v684, 0.0078125
        %v718 = vmul.f32 %v686, 0.0078125
        %v719 = vmul.f32 %v559, %v559
        %v720 = vmul.f32 %v560, %v560
        %v721 = vmul.f32 %v561, %v561
        %v722 = vmul.f32 %v562, %v562
        %v723 = vmul.f32 %v563, %v563
        %v724 = vmul.f32 %v564, %v564
        %v725 = vmul.f32 %v565, %v565
        %v726 = vmul.f32 %v566, %v566
        %v727 = vmul.f32 %v567, %v567
        %v728 = vmul.f32 %v568, %v568
        %v729 = vmul.f32 %v569, %v569
        %v730 = vmul.f32 %v570, %v570
        %v731 = vmul.f32 %v571, %v571
        %v732 = vmul.f32 %v572, %v572
        %v733 = vmul.f32 %v573, %v573
        %v734 = vmul.f32 %v574, %v574
        %v735 = vmul.f32 %v575, %v575
        %v736 = vmul.f32 %v576, %v576
        %v737 = vmul.f32 %v577, %v577
        %v738 = vmul.f32 %v578, %v578
        %v739 = vmul.f32 %v579, %v579
        %v740 = vmul.f32 %v580, %v580
        %v741 = vmul.f32 %v581, %v581
        %v742 = vmul.f32 %v582, %v582
        %v743 = vmul.f32 %v583, %v583
        %v744 = vmul.f32 %v584, %v584
        %v745 = vmul.f32 %v585, %v585
        %v746 = vmul.f32 %v586, %v586
        %v747 = vmul.f32 %v587, %v587
        %v748 = vmul.f32 %v588, %v588
        %v749 = vmul.f32 %v589, %v589
        %v750 = vmul.f32 %v590, %v590
        %v751 = vsub.f32 %v687, %v719
        %v752 = vsub.f32 %v688, %v720
        %v753 = vsub.f32 %v689, %v721
        %v754 = vsub.f32 %v690, %v722
        %v755 = vsub.f32 %v691, %v723
        %v756 = vsub.f32 %v692, %v724
        %v757 = vsub.f32 %v693, %v725
        %v758 = vsub.f32 %v694, %v726
        %v759 = vsub.f32 %v695, %v727
        %v760 = vsub.f32 %v696, %v728
        %v761 = vsub.f32 %v697, %v729
        %v762 = vsub.f32 %v698, %v730
        %v763 = vsub.f32 %v699, %v731
        %v764 = vsub.f32 %v700, %v732
        %v765 = vsub.f32 %v701, %v733
        %v766 = vsub.f32 %v702, %v734
        %v767 = vsub.f32 %v703, %v735
        %v768 = vsub.f32 %v704, %v736
        %v769 = vsub.f32 %v705, %v737
        %v770 = vsub.f32 %v706, %v738
        %v771 = vsub.f32 %v707, %v739
        %v772 = vsub.f32 %v708, %v740
        %v773 = vsub.f32 %v709, %v741
        %v774 = vsub.f32 %v710, %v742
        %v775 = vsub.f32 %v711, %v743
        %v776 = vsub.f32 %v712, %v744
        %v777 = vsub.f32 %v713, %v745
        %v778 = vsub.f32 %v714, %v746
        %v779 = vsub.f32 %v715, %v747
        %v780 = vsub.f32 %v716, %v748
        %v781 = vsub.f32 %v717, %v749
        %v782 = vsub.f32 %v718, %v750
        %v783 = vsub.f32 %v431, %v559
        %v784 = vsub.f32 %v432, %v560
        %v785 = vsub.f32 %v433, %v561
        %v786 = vsub.f32 %v434, %v562
        %v787 = vsub.f32 %v435, %v563
        %v788 = vsub.f32 %v436, %v564
        %v789 = vsub.f32 %v437, %v565
        %v790 = vsub.f32 %v438, %v566
        %v791 = vsub.f32 %v439, %v567
        %v792 = vsub.f32 %v440, %v568
        %v793 = vsub.f32 %v441, %v569
        %v794 = vsub.f32 %v442, %v570
        %v795 = vsub.f32 %v443, %v571
        %v796 = vsub.f32 %v444, %v572
        %v797 = vsub.f32 %v445, %v573
        %v798 = vsub.f32 %v446, %v574
        %v799 = vsub.f32 %v447, %v575
        %v800 = vsub.f32 %v448, %v576
        %v801 = vsub.f32 %v449, %v577
        %v802 = vsub.f32 %v450, %v578
        %v803 = vsub.f32 %v451, %v579
        %v804 = vsub.f32 %v452, %v580
        %v805 = vsub.f32 %v453, %v581
        %v806 = vsub.f32 %v454, %v582
        %v807 = vsub.f32 %v455, %v583
        %v808 = vsub.f32 %v456, %v584
        %v809 = vsub.f32 %v457, %v585
        %v810 = vsub.f32 %v458, %v586
        %v811 = vsub.f32 %v459, %v587
        %v812 = vsub.f32 %v460, %v588
        %v813 = vsub.f32 %v461, %v589
        %v814 = vsub.f32 %v462, %v590
        %v815 = vadd.f32 %v751, 1e-05
        %v816 = vadd.f32 %v752, 1e-05
        %v817 = vadd.f32 %v753, 1e-05
        %v818 = vadd.f32 %v754, 1e-05
        %v819 = vadd.f32 %v755, 1e-05
        %v820 = vadd.f32 %v756, 1e-05
        %v821 = vadd.f32 %v757, 1e-05
        %v822 = vadd.f32 %v758, 1e-05
        %v823 = vadd.f32 %v759, 1e-05
        %v824 = vadd.f32 %v760, 1e-05
        %v825 = vadd.f32 %v761, 1e-05
        %v826 = vadd.f32 %v762, 1e-05
        %v827 = vadd.f32 %v763, 1e-05
        %v828 = vadd.f32 %v764, 1e-05
        %v829 = vadd.f32 %v765, 1e-05
        %v830 = vadd.f32 %v766, 1e-05
        %v831 = vadd.f32 %v767, 1e-05
        %v832 = vadd.f32 %v768, 1e-05
        %v833 = vadd.f32 %v769, 1e-05
        %v834 = vadd.f32 %v770, 1e-05
        %v835 = vadd.f32 %v771, 1e-05
        %v836 = vadd.f32 %v772, 1e-05
        %v837 = vadd.f32 %v773, 1e-05
        %v838 = vadd.f32 %v774, 1e-05
        %v839 = vadd.f32 %v775, 1e-05
        %v840 = vadd.f32 %v776, 1e-05
        %v841 = vadd.f32 %v777, 1e-05
        %v842 = vadd.f32 %v778, 1e-05
        %v843 = vadd.f32 %v779, 1e-05
        %v844 = vadd.f32 %v780, 1e-05
        %v845 = vadd.f32 %v781, 1e-05
        %v846 = vadd.f32 %v782, 1e-05
        %v847 = vrsqrt.pop %v815
        %v848 = vmul.f32 %v847, %v815
        %v849 = vmul.f32 %v848, %v847
        %v850 = vmul.f32 0.5, %v849
        %v851 = vsub.f32 1.5, %v850
        %v852 = vmul.f32 %v847, %v851
        %vm853 = vweird.f32 %v815
        %vm854 = vweird.f32 %v847
        %vm855 = vmor %vm853, %vm854
        %v856 = vsel %vm855, %v847, %v852
        %v857 = vrsqrt.pop %v816
        %v858 = vmul.f32 %v857, %v816
        %v859 = vmul.f32 %v858, %v857
        %v860 = vmul.f32 0.5, %v859
        %v861 = vsub.f32 1.5, %v860
        %v862 = vmul.f32 %v857, %v861
        %vm863 = vweird.f32 %v816
        %vm864 = vweird.f32 %v857
        %vm865 = vmor %vm863, %vm864
        %v866 = vsel %vm865, %v857, %v862
        %v867 = vrsqrt.pop %v817
        %v868 = vmul.f32 %v867, %v817
        %v869 = vmul.f32 %v868, %v867
        %v870 = vmul.f32 0.5, %v869
        %v871 = vsub.f32 1.5, %v870
        %v872 = vmul.f32 %v867, %v871
        %vm873 = vweird.f32 %v817
        %vm874 = vweird.f32 %v867
        %vm875 = vmor %vm873, %vm874
        %v876 = vsel %vm875, %v867, %v872
        %v877 = vrsqrt.pop %v818
        %v878 = vmul.f32 %v877, %v818
        %v879 = vmul.f32 %v878, %v877
        %v880 = vmul.f32 0.5, %v879
        %v881 = vsub.f32 1.5, %v880
        %v882 = vmul.f32 %v877, %v881
        %vm883 = vweird.f32 %v818
        %vm884 = vweird.f32 %v877
        %vm885 = vmor %vm883, %vm884
        %v886 = vsel %vm885, %v877, %v882
        %v887 = vrsqrt.pop %v819
        %v888 = vmul.f32 %v887, %v819
        %v889 = vmul.f32 %v888, %v887
        %v890 = vmul.f32 0.5, %v889
        %v891 = vsub.f32 1.5, %v890
        %v892 = vmul.f32 %v887, %v891
        %vm893 = vweird.f32 %v819
        %vm894 = vweird.f32 %v887
        %vm895 = vmor %vm893, %vm894
        %v896 = vsel %vm895, %v887, %v892
        %v897 = vrsqrt.pop %v820
        %v898 = vmul.f32 %v897, %v820
        %v899 = vmul.f32 %v898, %v897
        %v900 = vmul.f32 0.5, %v899
        %v901 = vsub.f32 1.5, %v900
        %v902 = vmul.f32 %v897, %v901
        %vm903 = vweird.f32 %v820
        %vm904 = vweird.f32 %v897
        %vm905 = vmor %vm903, %vm904
        %v906 = vsel %vm905, %v897, %v902
        %v907 = vrsqrt.pop %v821
        %v908 = vmul.f32 %v907, %v821
        %v909 = vmul.f32 %v908, %v907
        %v910 = vmul.f32 0.5, %v909
        %v911 = vsub.f32 1.5, %v910
        %v912 = vmul.f32 %v907, %v911
        %vm913 = vweird.f32 %v821
        %vm914 = vweird.f32 %v907
        %vm915 = vmor %vm913, %vm914
        %v916 = vsel %vm915, %v907, %v912
        %v917 = vrsqrt.pop %v822
        %v918 = vmul.f32 %v917, %v822
        %v919 = vmul.f32 %v918, %v917
        %v920 = vmul.f32 0.5, %v919
        %v921 = vsub.f32 1.5, %v920
        %v922 = vmul.f32 %v917, %v921
        %vm923 = vweird.f32 %v822
        %vm924 = vweird.f32 %v917
        %vm925 = vmor %vm923, %vm924
        %v926 = vsel %vm925, %v917, %v922
        %v927 = vrsqrt.pop %v823
        %v928 = vmul.f32 %v927, %v823
        %v929 = vmul.f32 %v928, %v927
        %v930 = vmul.f32 0.5, %v929
        %v931 = vsub.f32 1.5, %v930
        %v932 = vmul.f32 %v927, %v931
        %vm933 = vweird.f32 %v823
        %vm934 = vweird.f32 %v927
        %vm935 = vmor %vm933, %vm934
        %v936 = vsel %vm935, %v927, %v932
        %v937 = vrsqrt.pop %v824
        %v938 = vmul.f32 %v937, %v824
        %v939 = vmul.f32 %v938, %v937
        %v940 = vmul.f32 0.5, %v939
        %v941 = vsub.f32 1.5, %v940
        %v942 = vmul.f32 %v937, %v941
        %vm943 = vweird.f32 %v824
        %vm944 = vweird.f32 %v937
        %vm945 = vmor %vm943, %vm944
        %v946 = vsel %vm945, %v937, %v942
        %v947 = vrsqrt.pop %v825
        %v948 = vmul.f32 %v947, %v825
        %v949 = vmul.f32 %v948, %v947
        %v950 = vmul.f32 0.5, %v949
        %v951 = vsub.f32 1.5, %v950
        %v952 = vmul.f32 %v947, %v951
        %vm953 = vweird.f32 %v825
        %vm954 = vweird.f32 %v947
        %vm955 = vmor %vm953, %vm954
        %v956 = vsel %vm955, %v947, %v952
        %v957 = vrsqrt.pop %v826
        %v958 = vmul.f32 %v957, %v826
        %v959 = vmul.f32 %v958, %v957
        %v960 = vmul.f32 0.5, %v959
        %v961 = vsub.f32 1.5, %v960
        %v962 = vmul.f32 %v957, %v961
        %vm963 = vweird.f32 %v826
        %vm964 = vweird.f32 %v957
        %vm965 = vmor %vm963, %vm964
        %v966 = vsel %vm965, %v957, %v962
        %v967 = vrsqrt.pop %v827
        %v968 = vmul.f32 %v967, %v827
        %v969 = vmul.f32 %v968, %v967
        %v970 = vmul.f32 0.5, %v969
        %v971 = vsub.f32 1.5, %v970
        %v972 = vmul.f32 %v967, %v971
        %vm973 = vweird.f32 %v827
        %vm974 = vweird.f32 %v967
        %vm975 = vmor %vm973, %vm974
        %v976 = vsel %vm975, %v967, %v972
        %v977 = vrsqrt.pop %v828
        %v978 = vmul.f32 %v977, %v828
        %v979 = vmul.f32 %v978, %v977
        %v980 = vmul.f32 0.5, %v979
        %v981 = vsub.f32 1.5, %v980
        %v982 = vmul.f32 %v977, %v981
        %vm983 = vweird.f32 %v828
        %vm984 = vweird.f32 %v977
        %vm985 = vmor %vm983, %vm984
        %v986 = vsel %vm985, %v977, %v982
        %v987 = vrsqrt.pop %v829
        %v988 = vmul.f32 %v987, %v829
        %v989 = vmul.f32 %v988, %v987
        %v990 = vmul.f32 0.5, %v989
        %v991 = vsub.f32 1.5, %v990
        %v992 = vmul.f32 %v987, %v991
        %vm993 = vweird.f32 %v829
        %vm994 = vweird.f32 %v987
        %vm995 = vmor %vm993, %vm994
        %v996 = vsel %vm995, %v987, %v992
        %v997 = vrsqrt.pop %v830
        %v998 = vmul.f32 %v997, %v830
        %v999 = vmul.f32 %v998, %v997
        %v1000 = vmul.f32 0.5, %v999
        %v1001 = vsub.f32 1.5, %v1000
        %v1002 = vmul.f32 %v997, %v1001
        %vm1003 = vweird.f32 %v830
        %vm1004 = vweird.f32 %v997
        %vm1005 = vmor %vm1003, %vm1004
        %v1006 = vsel %vm1005, %v997, %v1002
        %v1007 = vrsqrt.pop %v831
        %v1008 = vmul.f32 %v1007, %v831
        %v1009 = vmul.f32 %v1008, %v1007
        %v1010 = vmul.f32 0.5, %v1009
        %v1011 = vsub.f32 1.5, %v1010
        %v1012 = vmul.f32 %v1007, %v1011
        %vm1013 = vweird.f32 %v831
        %vm1014 = vweird.f32 %v1007
        %vm1015 = vmor %vm1013, %vm1014
        %v1016 = vsel %vm1015, %v1007, %v1012
        %v1017 = vrsqrt.pop %v832
        %v1018 = vmul.f32 %v1017, %v832
        %v1019 = vmul.f32 %v1018, %v1017
        %v1020 = vmul.f32 0.5, %v1019
        %v1021 = vsub.f32 1.5, %v1020
        %v1022 = vmul.f32 %v1017, %v1021
        %vm1023 = vweird.f32 %v832
        %vm1024 = vweird.f32 %v1017
        %vm1025 = vmor %vm1023, %vm1024
        %v1026 = vsel %vm1025, %v1017, %v1022
        %v1027 = vrsqrt.pop %v833
        %v1028 = vmul.f32 %v1027, %v833
        %v1029 = vmul.f32 %v1028, %v1027
        %v1030 = vmul.f32 0.5, %v1029
        %v1031 = vsub.f32 1.5, %v1030
        %v1032 = vmul.f32 %v1027, %v1031
        %vm1033 = vweird.f32 %v833
        %vm1034 = vweird.f32 %v1027
        %vm1035 = vmor %vm1033, %vm1034
        %v1036 = vsel %vm1035, %v1027, %v1032
        %v1037 = vrsqrt.pop %v834
        %v1038 = vmul.f32 %v1037, %v834
        %v1039 = vmul.f32 %v1038, %v1037
        %v1040 = vmul.f32 0.5, %v1039
        %v1041 = vsub.f32 1.5, %v1040
        %v1042 = vmul.f32 %v1037, %v1041
        %vm1043 = vweird.f32 %v834
        %vm1044 = vweird.f32 %v1037
        %vm1045 = vmor %vm1043, %vm1044
        %v1046 = vsel %vm1045, %v1037, %v1042
        %v1047 = vrsqrt.pop %v835
        %v1048 = vmul.f32 %v1047, %v835
        %v1049 = vmul.f32 %v1048, %v1047
        %v1050 = vmul.f32 0.5, %v1049
        %v1051 = vsub.f32 1.5, %v1050
        %v1052 = vmul.f32 %v1047, %v1051
        %vm1053 = vweird.f32 %v835
        %vm1054 = vweird.f32 %v1047
        %vm1055 = vmor %vm1053, %vm1054
        %v1056 = vsel %vm1055, %v1047, %v1052
        %v1057 = vrsqrt.pop %v836
        %v1058 = vmul.f32 %v1057, %v836
        %v1059 = vmul.f32 %v1058, %v1057
        %v1060 = vmul.f32 0.5, %v1059
        %v1061 = vsub.f32 1.5, %v1060
        %v1062 = vmul.f32 %v1057, %v1061
        %vm1063 = vweird.f32 %v836
        %vm1064 = vweird.f32 %v1057
        %vm1065 = vmor %vm1063, %vm1064
        %v1066 = vsel %vm1065, %v1057, %v1062
        %v1067 = vrsqrt.pop %v837
        %v1068 = vmul.f32 %v1067, %v837
        %v1069 = vmul.f32 %v1068, %v1067
        %v1070 = vmul.f32 0.5, %v1069
        %v1071 = vsub.f32 1.5, %v1070
        %v1072 = vmul.f32 %v1067, %v1071
        %vm1073 = vweird.f32 %v837
        %vm1074 = vweird.f32 %v1067
        %vm1075 = vmor %vm1073, %vm1074
        %v1076 = vsel %vm1075, %v1067, %v1072
        %v1077 = vrsqrt.pop %v838
        %v1078 = vmul.f32 %v1077, %v838
        %v1079 = vmul.f32 %v1078, %v1077
        %v1080 = vmul.f32 0.5, %v1079
        %v1081 = vsub.f32 1.5, %v1080
        %v1082 = vmul.f32 %v1077, %v1081
        %vm1083 = vweird.f32 %v838
        %vm1084 = vweird.f32 %v1077
        %vm1085 = vmor %vm1083, %vm1084
        %v1086 = vsel %vm1085, %v1077, %v1082
        %v1087 = vrsqrt.pop %v839
        %v1088 = vmul.f32 %v1087, %v839
        %v1089 = vmul.f32 %v1088, %v1087
        %v1090 = vmul.f32 0.5, %v1089
        %v1091 = vsub.f32 1.5, %v1090
        %v1092 = vmul.f32 %v1087, %v1091
        %vm1093 = vweird.f32 %v839
        %vm1094 = vweird.f32 %v1087
        %vm1095 = vmor %vm1093, %vm1094
        %v1096 = vsel %vm1095, %v1087, %v1092
        %v1097 = vrsqrt.pop %v840
        %v1098 = vmul.f32 %v1097, %v840
        %v1099 = vmul.f32 %v1098, %v1097
        %v1100 = vmul.f32 0.5, %v1099
        %v1101 = vsub.f32 1.5, %v1100
        %v1102 = vmul.f32 %v1097, %v1101
        %vm1103 = vweird.f32 %v840
        %vm1104 = vweird.f32 %v1097
        %vm1105 = vmor %vm1103, %vm1104
        %v1106 = vsel %vm1105, %v1097, %v1102
        %v1107 = vrsqrt.pop %v841
        %v1108 = vmul.f32 %v1107, %v841
        %v1109 = vmul.f32 %v1108, %v1107
        %v1110 = vmul.f32 0.5, %v1109
        %v1111 = vsub.f32 1.5, %v1110
        %v1112 = vmul.f32 %v1107, %v1111
        %vm1113 = vweird.f32 %v841
        %vm1114 = vweird.f32 %v1107
        %vm1115 = vmor %vm1113, %vm1114
        %v1116 = vsel %vm1115, %v1107, %v1112
        %v1117 = vrsqrt.pop %v842
        %v1118 = vmul.f32 %v1117, %v842
        %v1119 = vmul.f32 %v1118, %v1117
        %v1120 = vmul.f32 0.5, %v1119
        %v1121 = vsub.f32 1.5, %v1120
        %v1122 = vmul.f32 %v1117, %v1121
        %vm1123 = vweird.f32 %v842
        %vm1124 = vweird.f32 %v1117
        %vm1125 = vmor %vm1123, %vm1124
        %v1126 = vsel %vm1125, %v1117, %v1122
        %v1127 = vrsqrt.pop %v843
        %v1128 = vmul.f32 %v1127, %v843
        %v1129 = vmul.f32 %v1128, %v1127
        %v1130 = vmul.f32 0.5, %v1129
        %v1131 = vsub.f32 1.5, %v1130
        %v1132 = vmul.f32 %v1127, %v1131
        %vm1133 = vweird.f32 %v843
        %vm1134 = vweird.f32 %v1127
        %vm1135 = vmor %vm1133, %vm1134
        %v1136 = vsel %vm1135, %v1127, %v1132
        %v1137 = vrsqrt.pop %v844
        %v1138 = vmul.f32 %v1137, %v844
        %v1139 = vmul.f32 %v1138, %v1137
        %v1140 = vmul.f32 0.5, %v1139
        %v1141 = vsub.f32 1.5, %v1140
        %v1142 = vmul.f32 %v1137, %v1141
        %vm1143 = vweird.f32 %v844
        %vm1144 = vweird.f32 %v1137
        %vm1145 = vmor %vm1143, %vm1144
        %v1146 = vsel %vm1145, %v1137, %v1142
        %v1147 = vrsqrt.pop %v845
        %v1148 = vmul.f32 %v1147, %v845
        %v1149 = vmul.f32 %v1148, %v1147
        %v1150 = vmul.f32 0.5, %v1149
        %v1151 = vsub.f32 1.5, %v1150
        %v1152 = vmul.f32 %v1147, %v1151
        %vm1153 = vweird.f32 %v845
        %vm1154 = vweird.f32 %v1147
        %vm1155 = vmor %vm1153, %vm1154
        %v1156 = vsel %vm1155, %v1147, %v1152
        %v1157 = vrsqrt.pop %v846
        %v1158 = vmul.f32 %v1157, %v846
        %v1159 = vmul.f32 %v1158, %v1157
        %v1160 = vmul.f32 0.5, %v1159
        %v1161 = vsub.f32 1.5, %v1160
        %v1162 = vmul.f32 %v1157, %v1161
        %vm1163 = vweird.f32 %v846
        %vm1164 = vweird.f32 %v1157
        %vm1165 = vmor %vm1163, %vm1164
        %v1166 = vsel %vm1165, %v1157, %v1162
        %v1167 = vmul.f32 %v783, %v856
        %v1168 = vmul.f32 %v784, %v866
        %v1169 = vmul.f32 %v785, %v876
        %v1170 = vmul.f32 %v786, %v886
        %v1171 = vmul.f32 %v787, %v896
        %v1172 = vmul.f32 %v788, %v906
        %v1173 = vmul.f32 %v789, %v916
        %v1174 = vmul.f32 %v790, %v926
        %v1175 = vmul.f32 %v791, %v936
        %v1176 = vmul.f32 %v792, %v946
        %v1177 = vmul.f32 %v793, %v956
        %v1178 = vmul.f32 %v794, %v966
        %v1179 = vmul.f32 %v795, %v976
        %v1180 = vmul.f32 %v796, %v986
        %v1181 = vmul.f32 %v797, %v996
        %v1182 = vmul.f32 %v798, %v1006
        %v1183 = vmul.f32 %v799, %v1016
        %v1184 = vmul.f32 %v800, %v1026
        %v1185 = vmul.f32 %v801, %v1036
        %v1186 = vmul.f32 %v802, %v1046
        %v1187 = vmul.f32 %v803, %v1056
        %v1188 = vmul.f32 %v804, %v1066
        %v1189 = vmul.f32 %v805, %v1076
        %v1190 = vmul.f32 %v806, %v1086
        %v1191 = vmul.f32 %v807, %v1096
        %v1192 = vmul.f32 %v808, %v1106
        %v1193 = vmul.f32 %v809, %v1116
        %v1194 = vmul.f32 %v810, %v1126
        %v1195 = vmul.f32 %v811, %v1136
        %v1196 = vmul.f32 %v812, %v1146
        %v1197 = vmul.f32 %v813, %v1156
        %v1198 = vmul.f32 %v814, %v1166
        %v1199 = vld [vmem:[%s2] sm:$0x1]
        %v1201 = vperm.slane %v1199, 0
        %v1203 = vmul.f32 %v1167, %v1201
        %v1204 = vmul.f32 %v1168, %v1201
        %v1205 = vmul.f32 %v1169, %v1201
        %v1206 = vmul.f32 %v1170, %v1201
        %v1207 = vmul.f32 %v1171, %v1201
        %v1208 = vmul.f32 %v1172, %v1201
        %v1209 = vmul.f32 %v1173, %v1201
        %v1210 = vmul.f32 %v1174, %v1201
        %v1211 = vmul.f32 %v1175, %v1201
        %v1212 = vmul.f32 %v1176, %v1201
        %v1213 = vmul.f32 %v1177, %v1201
        %v1214 = vmul.f32 %v1178, %v1201
        %v1215 = vmul.f32 %v1179, %v1201
        %v1216 = vmul.f32 %v1180, %v1201
        %v1217 = vmul.f32 %v1181, %v1201
        %v1218 = vmul.f32 %v1182, %v1201
        %v1219 = vmul.f32 %v1183, %v1201
        %v1220 = vmul.f32 %v1184, %v1201
        %v1221 = vmul.f32 %v1185, %v1201
        %v1222 = vmul.f32 %v1186, %v1201
        %v1223 = vmul.f32 %v1187, %v1201
        %v1224 = vmul.f32 %v1188, %v1201
        %v1225 = vmul.f32 %v1189, %v1201
        %v1226 = vmul.f32 %v1190, %v1201
        %v1227 = vmul.f32 %v1191, %v1201
        %v1228 = vmul.f32 %v1192, %v1201
        %v1229 = vmul.f32 %v1193, %v1201
        %v1230 = vmul.f32 %v1194, %v1201
        %v1231 = vmul.f32 %v1195, %v1201
        %v1232 = vmul.f32 %v1196, %v1201
        %v1233 = vmul.f32 %v1197, %v1201
        %v1234 = vmul.f32 %v1198, %v1201
        %v1235 = vld [vmem:[%s3] sm:$0x1]
        %v1237 = vperm.slane %v1235, 0
        %v1239 = vadd.f32 %v1203, %v1237
        %v1240 = vadd.f32 %v1204, %v1237
        %v1241 = vadd.f32 %v1205, %v1237
        %v1242 = vadd.f32 %v1206, %v1237
        %v1243 = vadd.f32 %v1207, %v1237
        %v1244 = vadd.f32 %v1208, %v1237
        %v1245 = vadd.f32 %v1209, %v1237
        %v1246 = vadd.f32 %v1210, %v1237
        %v1247 = vadd.f32 %v1211, %v1237
        %v1248 = vadd.f32 %v1212, %v1237
        %v1249 = vadd.f32 %v1213, %v1237
        %v1250 = vadd.f32 %v1214, %v1237
        %v1251 = vadd.f32 %v1215, %v1237
        %v1252 = vadd.f32 %v1216, %v1237
        %v1253 = vadd.f32 %v1217, %v1237
        %v1254 = vadd.f32 %v1218, %v1237
        %v1255 = vadd.f32 %v1219, %v1237
        %v1256 = vadd.f32 %v1220, %v1237
        %v1257 = vadd.f32 %v1221, %v1237
        %v1258 = vadd.f32 %v1222, %v1237
        %v1259 = vadd.f32 %v1223, %v1237
        %v1260 = vadd.f32 %v1224, %v1237
        %v1261 = vadd.f32 %v1225, %v1237
        %v1262 = vadd.f32 %v1226, %v1237
        %v1263 = vadd.f32 %v1227, %v1237
        %v1264 = vadd.f32 %v1228, %v1237
        %v1265 = vadd.f32 %v1229, %v1237
        %v1266 = vadd.f32 %v1230, %v1237
        %v1267 = vadd.f32 %v1231, %v1237
        %v1268 = vadd.f32 %v1232, %v1237
        %v1269 = vadd.f32 %v1233, %v1237
        %v1270 = vadd.f32 %v1234, %v1237
        %v1271 = vpack.c.bf16 %v1240, %v1239
        %v1272 = vpack.c.bf16 %v1242, %v1241
        %v1273 = vpack.c.bf16 %v1244, %v1243
        %v1274 = vpack.c.bf16 %v1246, %v1245
        %v1275 = vpack.c.bf16 %v1248, %v1247
        %v1276 = vpack.c.bf16 %v1250, %v1249
        %v1277 = vpack.c.bf16 %v1252, %v1251
        %v1278 = vpack.c.bf16 %v1254, %v1253
        %v1279 = vpack.c.bf16 %v1256, %v1255
        %v1280 = vpack.c.bf16 %v1258, %v1257
        %v1281 = vpack.c.bf16 %v1260, %v1259
        %v1282 = vpack.c.bf16 %v1262, %v1261
        %v1283 = vpack.c.bf16 %v1264, %v1263
        %v1284 = vpack.c.bf16 %v1266, %v1265
        %v1285 = vpack.c.bf16 %v1268, %v1267
        %v1286 = vpack.c.bf16 %v1270, %v1269
        %v1287 = vld [vmem:[%s4] sm:$0xf]
        %v1288 = vld [vmem:[%s4 + $0x4] sm:$0xf]
        %v1289 = vld [vmem:[%s4 + $0x8] sm:$0xf]
        %v1290 = vld [vmem:[%s4 + $0xc] sm:$0xf]
        %v1291 = vld [vmem:[%s4 + $0x10] sm:$0xf]
        %v1292 = vld [vmem:[%s4 + $0x14] sm:$0xf]
        %v1293 = vld [vmem:[%s4 + $0x18] sm:$0xf]
        %v1294 = vld [vmem:[%s4 + $0x1c] sm:$0xf]
        %v1295 = vld [vmem:[%s4 + $0x20] sm:$0xf]
        %v1296 = vld [vmem:[%s4 + $0x24] sm:$0xf]
        %v1297 = vld [vmem:[%s4 + $0x28] sm:$0xf]
        %v1298 = vld [vmem:[%s4 + $0x2c] sm:$0xf]
        %v1299 = vld [vmem:[%s4 + $0x30] sm:$0xf]
        %v1300 = vld [vmem:[%s4 + $0x34] sm:$0xf]
        %v1301 = vld [vmem:[%s4 + $0x38] sm:$0xf]
        %v1302 = vld [vmem:[%s4 + $0x3c] sm:$0xf]
        %v1303 = vld [vmem:[%s5] sm:$0x1]
        %v1305 = vperm.slane %v1303, 0
        %v1323 = vunpack.c.l.b16 %v1287
        %v1324 = vunpack.c.l.b16 %v1288
        %v1325 = vunpack.c.l.b16 %v1289
        %v1326 = vunpack.c.l.b16 %v1290
        %v1327 = vunpack.c.l.b16 %v1291
        %v1328 = vunpack.c.l.b16 %v1292
        %v1329 = vunpack.c.l.b16 %v1293
        %v1330 = vunpack.c.l.b16 %v1294
        %v1331 = vunpack.c.l.b16 %v1295
        %v1332 = vunpack.c.l.b16 %v1296
        %v1333 = vunpack.c.l.b16 %v1297
        %v1334 = vunpack.c.l.b16 %v1298
        %v1335 = vunpack.c.l.b16 %v1299
        %v1336 = vunpack.c.l.b16 %v1300
        %v1337 = vunpack.c.l.b16 %v1301
        %v1338 = vunpack.c.l.b16 %v1302
        %v1339 = vpack.c.b16 %v1324, %v1323
        %v1340 = vpack.c.b16 %v1326, %v1325
        %v1341 = vpack.c.b16 %v1328, %v1327
        %v1342 = vpack.c.b16 %v1330, %v1329
        %v1343 = vpack.c.b16 %v1332, %v1331
        %v1344 = vpack.c.b16 %v1334, %v1333
        %v1345 = vpack.c.b16 %v1336, %v1335
        %v1346 = vpack.c.b16 %v1338, %v1337
        %1355 = vmatpush.bf16.msra.mxu0 %v1346
        %1356 = vmatpush.bf16.msra.mxu0 %v1345
        %1357 = vmatpush.bf16.msra.mxu0 %v1344
        %1358 = vmatpush.bf16.msra.mxu0 %v1343
        %1359 = vmatpush.bf16.msra.mxu0 %v1342
        %1360 = vmatpush.bf16.msra.mxu0 %v1341
        %1361 = vmatpush.bf16.msra.mxu0 %v1340
        %1362 = vmatpush.bf16.msra.mxu0 %v1339
        %1363 = vmatmul.bf16.gmra.mxu0 %v1271
        %v1364 = vpop.f32.mrf.mxu0
        %v1365 = vadd.f32 %v1305, %v1364
        %v1366 = vpop.f32.mrf.mxu0
        %v1367 = vadd.f32 %v1305, %v1366
        %1368 = vmatmul.bf16.gmra.mxu0 %v1272
        %v1369 = vpop.f32.mrf.mxu0
        %v1370 = vadd.f32 %v1305, %v1369
        %v1371 = vpop.f32.mrf.mxu0
        %v1372 = vadd.f32 %v1305, %v1371
        %1373 = vmatmul.bf16.gmra.mxu0 %v1273
        %v1374 = vpop.f32.mrf.mxu0
        %v1375 = vadd.f32 %v1305, %v1374
        %v1376 = vpop.f32.mrf.mxu0
        %v1377 = vadd.f32 %v1305, %v1376
        %1378 = vmatmul.bf16.gmra.mxu0 %v1274
        %v1379 = vpop.f32.mrf.mxu0
        %v1380 = vadd.f32 %v1305, %v1379
        %v1381 = vpop.f32.mrf.mxu0
        %v1382 = vadd.f32 %v1305, %v1381
        %1383 = vmatmul.bf16.gmra.mxu0 %v1275
        %v1384 = vpop.f32.mrf.mxu0
        %v1385 = vadd.f32 %v1305, %v1384
        %v1386 = vpop.f32.mrf.mxu0
        %v1387 = vadd.f32 %v1305, %v1386
        %1388 = vmatmul.bf16.gmra.mxu0 %v1276
        %v1389 = vpop.f32.mrf.mxu0
        %v1390 = vadd.f32 %v1305, %v1389
        %v1391 = vpop.f32.mrf.mxu0
        %v1392 = vadd.f32 %v1305, %v1391
        %1393 = vmatmul.bf16.gmra.mxu0 %v1277
        %v1394 = vpop.f32.mrf.mxu0
        %v1395 = vadd.f32 %v1305, %v1394
        %v1396 = vpop.f32.mrf.mxu0
        %v1397 = vadd.f32 %v1305, %v1396
        %1398 = vmatmul.bf16.gmra.mxu0 %v1278
        %v1399 = vpop.f32.mrf.mxu0
        %v1400 = vadd.f32 %v1305, %v1399
        %v1401 = vpop.f32.mrf.mxu0
        %v1402 = vadd.f32 %v1305, %v1401
        %1403 = vmatmul.bf16.gmra.mxu0 %v1279
        %v1404 = vpop.f32.mrf.mxu0
        %v1405 = vadd.f32 %v1305, %v1404
        %v1406 = vpop.f32.mrf.mxu0
        %v1407 = vadd.f32 %v1305, %v1406
        %1408 = vmatmul.bf16.gmra.mxu0 %v1280
        %v1409 = vpop.f32.mrf.mxu0
        %v1410 = vadd.f32 %v1305, %v1409
        %v1411 = vpop.f32.mrf.mxu0
        %v1412 = vadd.f32 %v1305, %v1411
        %1413 = vmatmul.bf16.gmra.mxu0 %v1281
        %v1414 = vpop.f32.mrf.mxu0
        %v1415 = vadd.f32 %v1305, %v1414
        %v1416 = vpop.f32.mrf.mxu0
        %v1417 = vadd.f32 %v1305, %v1416
        %1418 = vmatmul.bf16.gmra.mxu0 %v1282
        %v1419 = vpop.f32.mrf.mxu0
        %v1420 = vadd.f32 %v1305, %v1419
        %v1421 = vpop.f32.mrf.mxu0
        %v1422 = vadd.f32 %v1305, %v1421
        %1423 = vmatmul.bf16.gmra.mxu0 %v1283
        %v1424 = vpop.f32.mrf.mxu0
        %v1425 = vadd.f32 %v1305, %v1424
        %v1426 = vpop.f32.mrf.mxu0
        %v1427 = vadd.f32 %v1305, %v1426
        %1428 = vmatmul.bf16.gmra.mxu0 %v1284
        %v1429 = vpop.f32.mrf.mxu0
        %v1430 = vadd.f32 %v1305, %v1429
        %v1431 = vpop.f32.mrf.mxu0
        %v1432 = vadd.f32 %v1305, %v1431
        %1433 = vmatmul.bf16.gmra.mxu0 %v1285
        %v1434 = vpop.f32.mrf.mxu0
        %v1435 = vadd.f32 %v1305, %v1434
        %v1436 = vpop.f32.mrf.mxu0
        %v1437 = vadd.f32 %v1305, %v1436
        %1438 = vmatmul.bf16.gmra.mxu0 %v1286
        %v1439 = vpop.f32.mrf.mxu0
        %v1440 = vadd.f32 %v1305, %v1439
        %v1441 = vpop.f32.mrf.mxu0
        %v1442 = vadd.f32 %v1305, %v1441
        %1443 = vdwg.mxu0
        %v1444 = vpack.c.bf16 %v1365, %v1365
        %v1445 = vpack.c.bf16 %v1367, %v1367
        %v1446 = vpack.c.bf16 %v1370, %v1370
        %v1447 = vpack.c.bf16 %v1372, %v1372
        %v1448 = vpack.c.bf16 %v1375, %v1375
        %v1449 = vpack.c.bf16 %v1377, %v1377
        %v1450 = vpack.c.bf16 %v1380, %v1380
        %v1451 = vpack.c.bf16 %v1382, %v1382
        %v1452 = vpack.c.bf16 %v1385, %v1385
        %v1453 = vpack.c.bf16 %v1387, %v1387
        %v1454 = vpack.c.bf16 %v1390, %v1390
        %v1455 = vpack.c.bf16 %v1392, %v1392
        %v1456 = vpack.c.bf16 %v1395, %v1395
        %v1457 = vpack.c.bf16 %v1397, %v1397
        %v1458 = vpack.c.bf16 %v1400, %v1400
        %v1459 = vpack.c.bf16 %v1402, %v1402
        %v1460 = vpack.c.bf16 %v1405, %v1405
        %v1461 = vpack.c.bf16 %v1407, %v1407
        %v1462 = vpack.c.bf16 %v1410, %v1410
        %v1463 = vpack.c.bf16 %v1412, %v1412
        %v1464 = vpack.c.bf16 %v1415, %v1415
        %v1465 = vpack.c.bf16 %v1417, %v1417
        %v1466 = vpack.c.bf16 %v1420, %v1420
        %v1467 = vpack.c.bf16 %v1422, %v1422
        %v1468 = vpack.c.bf16 %v1425, %v1425
        %v1469 = vpack.c.bf16 %v1427, %v1427
        %v1470 = vpack.c.bf16 %v1430, %v1430
        %v1471 = vpack.c.bf16 %v1432, %v1432
        %v1472 = vpack.c.bf16 %v1435, %v1435
        %v1473 = vpack.c.bf16 %v1437, %v1437
        %v1474 = vpack.c.bf16 %v1440, %v1440
        %v1475 = vpack.c.bf16 %v1442, %v1442
        %1476 = vst [vmem:[%s318] sm:$0xf] %v1444
        %1477 = vst [vmem:[%s318 + $0x4] sm:$0xf] %v1445
        %1478 = vst [vmem:[%s318 + $0x8] sm:$0xf] %v1446
        %1479 = vst [vmem:[%s318 + $0xc] sm:$0xf] %v1447
        %1480 = vst [vmem:[%s318 + $0x10] sm:$0xf] %v1448
        %1481 = vst [vmem:[%s318 + $0x14] sm:$0xf] %v1449
        %1482 = vst [vmem:[%s318 + $0x18] sm:$0xf] %v1450
        %1483 = vst [vmem:[%s318 + $0x1c] sm:$0xf] %v1451
        %1484 = vst [vmem:[%s318 + $0x20] sm:$0xf] %v1452
        %1485 = vst [vmem:[%s318 + $0x24] sm:$0xf] %v1453
        %1486 = vst [vmem:[%s318 + $0x28] sm:$0xf] %v1454
        %1487 = vst [vmem:[%s318 + $0x2c] sm:$0xf] %v1455
        %1488 = vst [vmem:[%s318 + $0x30] sm:$0xf] %v1456
        %1489 = vst [vmem:[%s318 + $0x34] sm:$0xf] %v1457
        %1490 = vst [vmem:[%s318 + $0x38] sm:$0xf] %v1458
        %1491 = vst [vmem:[%s318 + $0x3c] sm:$0xf] %v1459
        %1492 = vst [vmem:[%s318 + $0x40] sm:$0xf] %v1460
        %1493 = vst [vmem:[%s318 + $0x44] sm:$0xf] %v1461
        %1494 = vst [vmem:[%s318 + $0x48] sm:$0xf] %v1462
        %1495 = vst [vmem:[%s318 + $0x4c] sm:$0xf] %v1463
        %1496 = vst [vmem:[%s318 + $0x50] sm:$0xf] %v1464
        %1497 = vst [vmem:[%s318 + $0x54] sm:$0xf] %v1465
        %1498 = vst [vmem:[%s318 + $0x58] sm:$0xf] %v1466
        %1499 = vst [vmem:[%s318 + $0x5c] sm:$0xf] %v1467
        %1500 = vst [vmem:[%s318 + $0x60] sm:$0xf] %v1468
        %1501 = vst [vmem:[%s318 + $0x64] sm:$0xf] %v1469
        %1502 = vst [vmem:[%s318 + $0x68] sm:$0xf] %v1470
        %1503 = vst [vmem:[%s318 + $0x6c] sm:$0xf] %v1471
        %1504 = vst [vmem:[%s318 + $0x70] sm:$0xf] %v1472
        %1505 = vst [vmem:[%s318 + $0x74] sm:$0xf] %v1473
        %1506 = vst [vmem:[%s318 + $0x78] sm:$0xf] %v1474
        %1507 = vst [vmem:[%s318 + $0x7c] sm:$0xf] %v1475
        %s1508 = sand.u32 %s172, 1
        %s1509 = scalar_lea.sflag [#allocation4], %s1508
        %s1510 = sand.u32 %s172, 1
        %s1511 = smul.addr %s1510, 128
        %s1512 = scalar_lea.vmem [#allocation5], %s1511
        %s1513 = sand.u32 %s198, 1
        %s1514 = scalar_lea.sflag [#allocation7], %s1513
        %s1515 = sand.u32 %s198, 1
        %s1516 = smul.addr %s1515, 256
        %s1517 = scalar_lea.vmem [#allocation6], %s1516
        // Predicated region
        $region49: #{tpu_custom_call.1} parent=43 // pred_check
          %p1518 = pneg %p182
        $region50: #{tpu_custom_call.1} parent=43 // pred_check_branch
          %1520 = sbr.rel (%p1518) target = $region52
        $region51: #{tpu_custom_call.1} parent=43 // pred_region
          %s1521 = smul.u32 32, %s28
          %1523 = vsyncadd %s1509, 0
          %s1524 = smul.addr %s1521, 4
          %s1525 = scalar_lea.hbm %s6, %s1524
          %s1526 = sshll.u32 %s1512, 4
          %s1527 = int_to_ptr.vmem [resolvable:$true] %s1526
          %s1528 = sshll.u32 %s1525, 4
          %s1529 = int_to_ptr.hbm [resolvable:$true] %s1528
          %1534 = dma.vmem_to_hbm [thread:$0]  %s1527, 2048, %s1529, %s1509, 64, 64, 4
        $region52: #{tpu_custom_call.1} parent=43 // pred_fallthru
          _
        // Predicated region
        $region53: #{tpu_custom_call.1} parent=43 // pred_check
          %p1535 = pneg %p208
        $region54: #{tpu_custom_call.1} parent=43 // pred_check_branch
          %1537 = sbr.rel (%p1535) target = $region56
        $region55: #{tpu_custom_call.1} parent=43 // pred_region
          %s1538 = smul.u32 32, %s28
          %1540 = vsyncadd %s1514, 0
          %s1541 = smul.addr %s1538, 8
          %s1542 = scalar_lea.hbm %s7, %s1541
          %s1543 = sshll.u32 %s1517, 4
          %s1544 = int_to_ptr.vmem [resolvable:$true] %s1543
          %s1545 = sshll.u32 %s1542, 4
          %s1546 = int_to_ptr.hbm [resolvable:$true] %s1545
          %1551 = dma.vmem_to_hbm [thread:$0]  %s1544, 4096, %s1546, %s1514, 128, 128, 8
        $region56: #{tpu_custom_call.1} parent=43 // pred_fallthru
          _
      $region44: #{tpu_custom_call.1} parent=5 // pred_fallthru
        _
      %p1552 = scmp.le.s32.totalorder 2, %s23
      // Predicated region
      $region57: #{tpu_custom_call.1} parent=5 // pred_check
        %p1553 = pneg %p1552
      $region58: #{tpu_custom_call.1} parent=5 // pred_check_branch
        %1555 = sbr.rel (%p1553) target = $region60
      $region59: #{tpu_custom_call.1} parent=5 // pred_region
        %s1556 = ssub.s32 %s23, 2
        // Predicated region
        $region61: #{tpu_custom_call.1} parent=59 // pred_check
          %p1557 = pneg %p188
        $region62: #{tpu_custom_call.1} parent=59 // pred_check_branch
          %1559 = sbr.rel (%p1557) target = $region64
        $region63: #{tpu_custom_call.1} parent=59 // pred_region
          %s1560 = sand.u32 %s173, 1
          %s1561 = scalar_lea.sflag [#allocation4], %s1560
          %s1562 = sand.u32 %s173, 1
          %s1563 = smul.addr %s1562, 128
          %s1564 = scalar_lea.vmem [#allocation5], %s1563
          %1566 = dma.done %s1561, 2048
        $region64: #{tpu_custom_call.1} parent=59 // pred_fallthru
          _
        // Predicated region
        $region65: #{tpu_custom_call.1} parent=59 // pred_check
          %p1567 = pneg %p214
        $region66: #{tpu_custom_call.1} parent=59 // pred_check_branch
          %1569 = sbr.rel (%p1567) target = $region68
        $region67: #{tpu_custom_call.1} parent=59 // pred_region
          %s1570 = sand.u32 %s199, 1
          %s1571 = scalar_lea.sflag [#allocation7], %s1570
          %s1572 = sand.u32 %s199, 1
          %s1573 = smul.addr %s1572, 256
          %s1574 = scalar_lea.vmem [#allocation6], %s1573
          %1576 = dma.done %s1571, 4096
        $region68: #{tpu_custom_call.1} parent=59 // pred_fallthru
          _
      $region60: #{tpu_custom_call.1} parent=5 // pred_fallthru
        _
    $region6: #{tpu_custom_call.1} parent=1 // loop_footer
      %s27 = sadd.s32 1, %s23
    $region7: #{tpu_custom_call.1} parent=1 // loop_footer_branch
      %22 = sbr.rel target = $region3
    $region8: #{tpu_custom_call.1} parent=1 // loop_exit
      _
    %1577 = vsyncpa [#allocation3], 1
    %s1578 = scalar_lea.sflag [#allocation3], 1
    %1579 = vsyncpa %s1578, 1
    %1580 = vsyncpa [#allocation4], 1
    %s1581 = scalar_lea.sflag [#allocation4], 1
    %1582 = vsyncpa %s1581, 1
    %1583 = vsyncpa [#allocation7], 1
    %s1584 = scalar_lea.sflag [#allocation7], 1
    %1585 = vsyncpa %s1584, 1

</llo_original>
